<compile_context>
chip_gen: v7x
topology: tpu7x:2x2x1
jax: 0.10.0
libtpu: 0.0.40
codegen_flags: <defaults>
</compile_context>

<pallas_src>
import functools

import numpy as np

import jax
import jax.numpy as jnp
from jax.experimental import pallas as pl
from jax.experimental.pallas import tpu as pltpu  # noqa: F401  (TPU backend; defaults suffice at this size)


# --------------------------------------------------------------------------- Pallas kernel

def _fused_kernel(cols1_ref, sens2_ref,
                  w1_ref, b1_ref, w2_ref, b2_ref, w3_ref, b3_ref,
                  wfc_ref, bfc_ref,
                  wm1_ref, bm1_ref, wm2_ref, bm2_ref,
                  wm3_ref, bm3_ref, wm4_ref, bm4_ref,
                  wout_ref, bout_ref, out_ref,
                  *, batch, n_out):
    """Whole network in one kernel; every intermediate stays in VMEM.

    Actor and critic are fused: the feature axis of every intermediate is [actor | critic]
    and the fused weights are concatenated / block-diagonal, so each layer is a single
    lane-dense bf16 MXU matmul with f32 accumulation.

    cols1 rows are ordered (conv2-tap t=(dh,dw), conv2-position pos2, batch):
        row = t*(9*B) + pos2*B + b,   features = conv1 patch in (kh, kw, cin) order.
    """
    B, n = batch, n_out
    G = 9 * B                      # rows per conv2-tap block (= #pos2 * batch)

    def layer(x, w_ref, b_ref, relu=True):
        y = jnp.dot(x.astype(jnp.bfloat16), w_ref[...],
                    preferred_element_type=jnp.float32) + b_ref[...]
        return jnp.maximum(y, 0.0) if relu else y

    # conv1 (image normalization folded into w1/b1): (16*9*B, 64) = [actor 32 | critic 32].
    h1 = layer(cols1_ref[...], w1_ref, b1_ref)

    # conv2 im2col: tap t is the contiguous row block [t*G, (t+1)*G); lane-concat the 16 taps.
    cols2 = jnp.concatenate([h1[t * G:(t + 1) * G, :] for t in range(16)], axis=1)
    h2 = layer(cols2, w2_ref, b2_ref)                         # (9*B, 128), rows (pos2, b)

    # conv3 (1x1 output): receptive field = all 9 pos2 blocks, lane-concatenated per batch row.
    cols3 = jnp.concatenate([h2[p * B:(p + 1) * B, :] for p in range(9)], axis=1)
    h3 = layer(cols3, w3_ref, b3_ref)                         # (B, 128) = [actor 64 | critic 64]

    # CNN fc heads (spatial size is 1x1, so the Flatten is the identity here).
    hcnn = layer(h3, wfc_ref, bfc_ref)                        # (B, n+1) = [actor n | critic 1]

    # Fused actor|critic MLP branch on sens2.
    m = layer(sens2_ref[...], wm1_ref, bm1_ref)
    m = layer(m, wm2_ref, bm2_ref)
    m = layer(m, wm3_ref, bm3_ref)
    hmlp = layer(m, wm4_ref, bm4_ref)                         # (B, n+1) = [actor n | critic 1]

    # Output heads: actor = tanh(Linear(cat(cnn, mlp))), critic = Linear(cat(cnn, mlp)).
    z = jnp.concatenate([hcnn[:, :n], hmlp[:, :n],
                         hcnn[:, n:n + 1], hmlp[:, n:n + 1]], axis=1)   # (B, 2n+2)
    o = layer(z, wout_ref, bout_ref, relu=False)              # (B, 2n)
    mu = jnp.tanh(o[:, :n])
    out_ref[...] = jnp.concatenate([mu, o[:, n:]], axis=1).astype(out_ref.dtype)


# --------------------------------------------------------------------------- forward wrapper

def make_forward(image_shape, sens2_shape, num_outputs):
    del sens2_shape  # shapes are taken from the runtime arrays
    H, W = image_shape
    ho1, wo1 = (H - 8) // 4 + 1, (W - 8) // 4 + 1             # conv1 output (8, 8)
    ho2, wo2 = (ho1 - 4) // 2 + 1, (wo1 - 4) // 2 + 1         # conv2 output (3, 3)
    ho3, wo3 = ho2 - 2, wo2 - 2                               # conv3 output (1, 1)
    # The fused kernel is specialized to this module's conv geometry (8 -> 3 -> 1 spatial)
    # and to stride-4 evenly tiling the image.
    assert (ho1, wo1, ho2, wo2, ho3, wo3) == (8, 8, 3, 3, 1, 1)
    assert H == 4 * (ho1 + 1) and W == 4 * (wo1 + 1)
    n = num_outputs

    # Row-duplication table: (t=(dh,dw), pos2=(i2,j2)) -> conv1 output position index.
    dup = np.empty((16, 9), np.int32)
    for dh in range(4):
        for dw in range(4):
            for i2 in range(3):
                for j2 in range(3):
                    dup[dh * 4 + dw, i2 * 3 + j2] = (2 * i2 + dh) * wo1 + (2 * j2 + dw)
    assert dup.min() >= 0 and dup.max() < ho1 * wo1           # static, in-range indices
    dup_idx = jnp.asarray(dup.reshape(-1))

    def forward(fp, img, sens2):
        """Returns (mu, std, value)."""
        B = img.shape[0]

        # conv1 im2col with coarse 4x4-spatial-block slices (stride 4 divides kernel 8 and H/W):
        #   patches[b, i1*8 + j1, (kh, kw, c)] = img[b, 4*i1 + kh, 4*j1 + kw, c]
        xb = img.reshape(B, ho1 + 1, 4, wo1 + 1, 4, 3)
        parts = [xb[:, di:di + ho1, :, dj:dj + wo1, :, :] for di in (0, 1) for dj in (0, 1)]
        x4 = jnp.stack(parts, axis=0).reshape(2, 2, B, ho1, 4, wo1, 4, 3)
        patches = jnp.transpose(x4, (2, 3, 5, 0, 4, 1, 6, 7))        # (B,i1,j1,di,kh',dj,kw',c)
        patches = patches.reshape(B, ho1 * wo1, 8 * 8 * 3)

        # Duplicate rows into conv2-tap-major order (coarse 768-byte row copies), batch innermost.
        cols1 = jnp.take(patches, dup_idx, axis=1)                   # (B, 144, 192)
        cols1 = jnp.transpose(cols1, (1, 0, 2)).reshape(16 * 9 * B, 8 * 8 * 3)
        cols1 = cols1.astype(jnp.bfloat16)

        out = pl.pallas_call(
            functools.partial(_fused_kernel, batch=B, n_out=n),
            out_shape=jax.ShapeDtypeStruct((B, 2 * n), jnp.float32),
        )(cols1, sens2.astype(jnp.bfloat16),
          fp["w1"], fp["b1"], fp["w2"], fp["b2"], fp["w3"], fp["b3"],
          fp["wfc"], fp["bfc"],
          fp["wm1"], fp["bm1"], fp["wm2"], fp["bm2"],
          fp["wm3"], fp["bm3"], fp["wm4"], fp["bm4"],
          fp["wout"], fp["bout"])

        mu = out[:, :n]
        value = out[:, n:]
        std = jnp.broadcast_to(jnp.exp(fp["log_std"]), mu.shape)
        # TODO(synk): torch.distributions.Normal(mu, std) has no Pallas equivalent; the
        # distribution parameters (mu, std) are returned instead.
        return mu, std, value

    return forward


# --------------------------------------------------------------------------- parameters

def output_size(in_size, kernel_size, stride, padding):
    conv_size = list(in_size)
    for i in range(len(kernel_size)):
        conv_size[0] = int((conv_size[0] - kernel_size[i] + 2 * padding[i]) / stride[i]) + 1
        conv_size[1] = int((conv_size[1] - kernel_size[i] + 2 * padding[i]) / stride[i]) + 1
    return conv_size


def _conv_init(key, k, cin, cout):
    # xavier_normal_: std = sqrt(2 / (fan_in + fan_out)); stored as (kh, kw, cin, cout).
    fan_in, fan_out = cin * k * k, cout * k * k
    std = (2.0 / (fan_in + fan_out)) ** 0.5
    w = jax.random.normal(key, (k, k, cin, cout), jnp.float32) * std
    b = jnp.zeros((cout,), jnp.float32)
    return w, b


def _linear_init(key, in_f, out_f):
    # nn.init.normal_(weight, 0, 0.1); bias = 0.1.
    w = jax.random.normal(key, (in_f, out_f), jnp.float32) * 0.1
    b = jnp.full((out_f,), 0.1, jnp.float32)
    return w, b


def build_params(image_shape, sens2_shape, num_outputs, std=-0.5, seed=0):
    fc = output_size(list(image_shape), [8, 4, 3], [4, 2, 1], [0, 0, 0])
    fc_feat = fc[0] * fc[1] * 64
    keys = jax.random.split(jax.random.PRNGKey(seed), 18)
    p = {}
    p["a_c1"] = _conv_init(keys[0], 8, 3, 32)
    p["a_c2"] = _conv_init(keys[1], 4, 32, 64)
    p["a_c3"] = _conv_init(keys[2], 3, 64, 64)
    p["a_fc"] = _linear_init(keys[3], fc_feat, num_outputs)
    p["a_m1"] = _linear_init(keys[4], sens2_shape, sens2_shape * 5)
    p["a_m2"] = _linear_init(keys[5], sens2_shape * 5, (num_outputs + sens2_shape) * 5)
    p["a_m3"] = _linear_init(keys[6], (num_outputs + sens2_shape) * 5, num_outputs * 5)
    p["a_m4"] = _linear_init(keys[7], num_outputs * 5, num_outputs)
    p["a_out"] = _linear_init(keys[8], num_outputs * 2, num_outputs)
    p["c_c1"] = _conv_init(keys[9], 8, 3, 32)
    p["c_c2"] = _conv_init(keys[10], 4, 32, 64)
    p["c_c3"] = _conv_init(keys[11], 3, 64, 64)
    p["c_fc"] = _linear_init(keys[12], fc_feat, 1)
    p["c_m1"] = _linear_init(keys[13], sens2_shape, sens2_shape * 5)
    p["c_m2"] = _linear_init(keys[14], sens2_shape * 5, sens2_shape * 5)
    p["c_m3"] = _linear_init(keys[15], sens2_shape * 5, 5)
    p["c_m4"] = _linear_init(keys[16], 5, 1)
    p["c_out"] = _linear_init(keys[17], 2, num_outputs)
    p["log_std"] = jnp.full((1, num_outputs), std, jnp.float32)
    return p


# --------------------------------------------------------------------------- actor|critic fusion

def _block_diag(wa, wc):
    ia, oa = wa.shape
    ic, oc = wc.shape
    w = jnp.zeros((ia + ic, oa + oc), jnp.float32)
    w = w.at[:ia, :oa].set(wa)
    w = w.at[ia:, oa:].set(wc)
    return w


def _block_diag_conv(wa, wc):
    # (k,k,cin_a,cout_a) + (k,k,cin_c,cout_c) -> (k*k*(cin_a+cin_c), cout_a+cout_c)
    k = wa.shape[0]
    cia, coa = wa.shape[2], wa.shape[3]
    cic, coc = wc.shape[2], wc.shape[3]
    w = jnp.zeros((k, k, cia + cic, coa + coc), jnp.float32)
    w = w.at[:, :, :cia, :coa].set(wa)
    w = w.at[:, :, cia:, coa:].set(wc)
    return w.reshape(k * k * (cia + cic), coa + coc)


def _bf16(w):
    return w.astype(jnp.bfloat16)


def _bias(*parts):
    return jnp.concatenate(parts).reshape(1, -1).astype(jnp.float32)


def fuse_params(p):
    """Build the fused actor|critic (bf16 weight / f32 bias) set consumed by the kernel."""
    f = {}

    # conv1: both branches see the same image -> concat along Cout; fold (x-127)/255 in.
    # The constant fold term is computed from the bf16-ROUNDED scaled weights (cast back to
    # f32), so it exactly matches what the MXU multiplies (review correctness fix).
    w1 = jnp.concatenate([p["a_c1"][0], p["c_c1"][0]], axis=3).reshape(8 * 8 * 3, -1)
    b1 = jnp.concatenate([p["a_c1"][1], p["c_c1"][1]])
    w1s = (w1 / 255.0).astype(jnp.bfloat16)
    f["w1"] = w1s
    f["b1"] = (b1 - 127.0 * jnp.sum(w1s.astype(jnp.float32), axis=0)
               ).reshape(1, -1).astype(jnp.float32)

    # conv2 / conv3: block-diagonal over the fused channel axis, rows in (kh, kw, cin) order.
    f["w2"] = _bf16(_block_diag_conv(p["a_c2"][0], p["c_c2"][0]))
    f["b2"] = _bias(p["a_c2"][1], p["c_c2"][1])
    f["w3"] = _bf16(_block_diag_conv(p["a_c3"][0], p["c_c3"][0]))
    f["b3"] = _bias(p["a_c3"][1], p["c_c3"][1])

    # CNN fc heads: conv3 spatial output is 1x1, so the Flatten order is just the channel axis
    # and the fused fc weight is plain block-diagonal over [actor 64 | critic 64] channels.
    f["wfc"] = _bf16(_block_diag(p["a_fc"][0], p["c_fc"][0]))
    f["bfc"] = _bias(p["a_fc"][1], p["c_fc"][1])

    # MLP branches: layer 1 shares the sens2 input (concat along out); layers 2-4 block-diag.
    f["wm1"] = _bf16(jnp.concatenate([p["a_m1"][0], p["c_m1"][0]], axis=1))
    f["bm1"] = _bias(p["a_m1"][1], p["c_m1"][1])
    for name in ("m2", "m3", "m4"):
        f["w" + name] = _bf16(_block_diag(p["a_" + name][0], p["c_" + name][0]))
        f["b" + name] = _bias(p["a_" + name][1], p["c_" + name][1])

    # Output heads: actor rows = [cnn_actor | mlp_actor], critic rows = [cnn_critic | mlp_critic].
    f["wout"] = _bf16(_block_diag(p["a_out"][0], p["c_out"][0]))
    f["bout"] = _bias(p["a_out"][1], p["c_out"][1])

    f["log_std"] = p["log_std"]
    return f


# --------------------------------------------------------------------------- plain-JAX reference

def reference_forward(p, img, sens2):
    """Unfused f32 reference mirroring the PyTorch module layer by layer."""
    def conv(x, w, b, stride):
        y = jax.lax.conv_general_dilated(
            x, w, window_strides=(stride, stride), padding="VALID",
            dimension_numbers=("NHWC", "HWIO", "NHWC"))
        return y + b

    x0 = (img - 127.0) / 255.0

    def cnn(c1, c2, c3, fc):
        h = jax.nn.relu(conv(x0, *c1, 4))
        h = jax.nn.relu(conv(h, *c2, 2))
        h = conv(h, *c3, 1)
        h = jax.nn.relu(h.reshape(h.shape[0], -1))      # 1x1 spatial -> flatten == channels
        return jax.nn.relu(h @ fc[0] + fc[1])

    def mlp(x, *layers):
        for w, b in layers:
            x = jax.nn.relu(x @ w + b)
        return x

    x1 = cnn(p["a_c1"], p["a_c2"], p["a_c3"], p["a_fc"])
    x2 = mlp(sens2, p["a_m1"], p["a_m2"], p["a_m3"], p["a_m4"])
    mu = jnp.tanh(jnp.concatenate([x1, x2], axis=1) @ p["a_out"][0] + p["a_out"][1])
    std = jnp.broadcast_to(jnp.exp(p["log_std"]), mu.shape)

    y1 = cnn(p["c_c1"], p["c_c2"], p["c_c3"], p["c_fc"])
    y2 = mlp(sens2, p["c_m1"], p["c_m2"], p["c_m3"], p["c_m4"])
    value = jnp.concatenate([y1, y2], axis=1) @ p["c_out"][0] + p["c_out"][1]
    return mu, std, value


# --------------------------------------------------------------------------- main

if __name__ == "__main__":
    image_shape = [36, 36]     # conv chain: 36 -> 8 -> 3 -> 1 spatial
    sens2_shape = 8
    num_outputs = 4
    batch = 2

    params = build_params(image_shape, sens2_shape, num_outputs, std=-0.5, seed=0)
    fused = fuse_params(params)

    key = jax.random.PRNGKey(0)
    k_img, k_sens = jax.random.split(key)
    img = jax.random.uniform(k_img, (batch, image_shape[0], image_shape[1], 3),
                             jnp.float32, 0.0, 255.0)
    sens2 = jax.random.normal(k_sens, (batch, sens2_shape), jnp.float32)

    fwd = jax.jit(make_forward(image_shape, sens2_shape, num_outputs))
    mu, std, value = fwd(fused, img, sens2)
    jax.block_until_ready((mu, std, value))

    assert mu.shape == (batch, num_outputs)
    assert std.shape == (batch, num_outputs)
    assert value.shape == (batch, num_outputs)
    assert bool(jnp.all(jnp.isfinite(mu))) and bool(jnp.all(jnp.isfinite(value)))

    # Cross-check the fused bf16 Pallas path against the unfused f32 plain-JAX reference.
    mu_r, std_r, value_r = reference_forward(params, img, sens2)

    def close(a, b, tol=5e-2):
        return float(jnp.max(jnp.abs(a - b))) <= tol * (1.0 + float(jnp.max(jnp.abs(b))))

    assert close(mu, mu_r)
    assert close(value, value_r)
    assert close(std, std_r)

    print("KERNEL_OK")
</pallas_src>

<mosaic_0001>
module attributes {stable_mosaic.version = 11 : i64} {
  func.func @_fused_kernel(%arg0: memref<288x192xbf16, #tpu.memory_space<vmem>>, %arg1: memref<2x8xbf16, #tpu.memory_space<vmem>>, %arg2: memref<192x64xbf16, #tpu.memory_space<vmem>>, %arg3: memref<1x64xf32, #tpu.memory_space<vmem>>, %arg4: memref<1024x128xbf16, #tpu.memory_space<vmem>>, %arg5: memref<1x128xf32, #tpu.memory_space<vmem>>, %arg6: memref<1152x128xbf16, #tpu.memory_space<vmem>>, %arg7: memref<1x128xf32, #tpu.memory_space<vmem>>, %arg8: memref<128x5xbf16, #tpu.memory_space<vmem>>, %arg9: memref<1x5xf32, #tpu.memory_space<vmem>>, %arg10: memref<8x80xbf16, #tpu.memory_space<vmem>>, %arg11: memref<1x80xf32, #tpu.memory_space<vmem>>, %arg12: memref<80x100xbf16, #tpu.memory_space<vmem>>, %arg13: memref<1x100xf32, #tpu.memory_space<vmem>>, %arg14: memref<100x25xbf16, #tpu.memory_space<vmem>>, %arg15: memref<1x25xf32, #tpu.memory_space<vmem>>, %arg16: memref<25x5xbf16, #tpu.memory_space<vmem>>, %arg17: memref<1x5xf32, #tpu.memory_space<vmem>>, %arg18: memref<10x8xbf16, #tpu.memory_space<vmem>>, %arg19: memref<1x8xf32, #tpu.memory_space<vmem>>, %arg20: memref<2x8xf32, #tpu.memory_space<vmem>>) attributes {dimension_semantics = [], scalar_prefetch = 0 : i64, scratch_operands = 0 : i64, tpu.core_type = #tpu.core_type<tc>} {
    %c0 = arith.constant 0 : index
    %c0_0 = arith.constant 0 : index
    %0 = vector.load %arg0[%c0, %c0_0] : memref<288x192xbf16, #tpu.memory_space<vmem>>, vector<288x192xbf16>
    %c0_1 = arith.constant 0 : index
    %c0_2 = arith.constant 0 : index
    %1 = vector.load %arg2[%c0_1, %c0_2] : memref<192x64xbf16, #tpu.memory_space<vmem>>, vector<192x64xbf16>
    %cst = arith.constant dense<0.000000e+00> : vector<288x64xf32>
    %2 = tpu.matmul %0, %1, %cst {dimension_numbers = #tpu.dot_dimension_numbers<[1], [0], [0], [1], [0, 0, 1, 1], [], []>} : vector<288x192xbf16>, vector<192x64xbf16>, vector<288x64xf32> -> vector<288x64xf32>
    %c0_3 = arith.constant 0 : index
    %c0_4 = arith.constant 0 : index
    %3 = vector.load %arg3[%c0_3, %c0_4] : memref<1x64xf32, #tpu.memory_space<vmem>>, vector<1x64xf32>
    %4 = vector.broadcast %3 : vector<1x64xf32> to vector<288x64xf32>
    %5 = arith.addf %2, %4 : vector<288x64xf32>
    %cst_5 = arith.constant 0.000000e+00 : f32
    %6 = vector.broadcast %cst_5 : f32 to vector<288x64xf32>
    %7 = arith.maximumf %5, %6 : vector<288x64xf32>
    %8 = vector.extract_strided_slice %7 {offsets = [0, 0], sizes = [18, 64], strides = [1, 1]} : vector<288x64xf32> to vector<18x64xf32>
    %9 = vector.extract_strided_slice %7 {offsets = [18, 0], sizes = [18, 64], strides = [1, 1]} : vector<288x64xf32> to vector<18x64xf32>
    %10 = vector.extract_strided_slice %7 {offsets = [36, 0], sizes = [18, 64], strides = [1, 1]} : vector<288x64xf32> to vector<18x64xf32>
    %11 = vector.extract_strided_slice %7 {offsets = [54, 0], sizes = [18, 64], strides = [1, 1]} : vector<288x64xf32> to vector<18x64xf32>
    %12 = vector.extract_strided_slice %7 {offsets = [72, 0], sizes = [18, 64], strides = [1, 1]} : vector<288x64xf32> to vector<18x64xf32>
    %13 = vector.extract_strided_slice %7 {offsets = [90, 0], sizes = [18, 64], strides = [1, 1]} : vector<288x64xf32> to vector<18x64xf32>
    %14 = vector.extract_strided_slice %7 {offsets = [108, 0], sizes = [18, 64], strides = [1, 1]} : vector<288x64xf32> to vector<18x64xf32>
    %15 = vector.extract_strided_slice %7 {offsets = [126, 0], sizes = [18, 64], strides = [1, 1]} : vector<288x64xf32> to vector<18x64xf32>
    %16 = vector.extract_strided_slice %7 {offsets = [144, 0], sizes = [18, 64], strides = [1, 1]} : vector<288x64xf32> to vector<18x64xf32>
    %17 = vector.extract_strided_slice %7 {offsets = [162, 0], sizes = [18, 64], strides = [1, 1]} : vector<288x64xf32> to vector<18x64xf32>
    %18 = vector.extract_strided_slice %7 {offsets = [180, 0], sizes = [18, 64], strides = [1, 1]} : vector<288x64xf32> to vector<18x64xf32>
    %19 = vector.extract_strided_slice %7 {offsets = [198, 0], sizes = [18, 64], strides = [1, 1]} : vector<288x64xf32> to vector<18x64xf32>
    %20 = vector.extract_strided_slice %7 {offsets = [216, 0], sizes = [18, 64], strides = [1, 1]} : vector<288x64xf32> to vector<18x64xf32>
    %21 = vector.extract_strided_slice %7 {offsets = [234, 0], sizes = [18, 64], strides = [1, 1]} : vector<288x64xf32> to vector<18x64xf32>
    %22 = vector.extract_strided_slice %7 {offsets = [252, 0], sizes = [18, 64], strides = [1, 1]} : vector<288x64xf32> to vector<18x64xf32>
    %23 = vector.extract_strided_slice %7 {offsets = [270, 0], sizes = [18, 64], strides = [1, 1]} : vector<288x64xf32> to vector<18x64xf32>
    %24 = tpu.concatenate %8, %9, %10, %11, %12, %13, %14, %15, %16, %17, %18, %19, %20, %21, %22, %23 in 1 : vector<18x64xf32>, vector<18x64xf32>, vector<18x64xf32>, vector<18x64xf32>, vector<18x64xf32>, vector<18x64xf32>, vector<18x64xf32>, vector<18x64xf32>, vector<18x64xf32>, vector<18x64xf32>, vector<18x64xf32>, vector<18x64xf32>, vector<18x64xf32>, vector<18x64xf32>, vector<18x64xf32>, vector<18x64xf32> -> vector<18x1024xf32>
    %25 = arith.truncf %24 : vector<18x1024xf32> to vector<18x1024xbf16>
    %c0_6 = arith.constant 0 : index
    %c0_7 = arith.constant 0 : index
    %26 = vector.load %arg4[%c0_6, %c0_7] : memref<1024x128xbf16, #tpu.memory_space<vmem>>, vector<1024x128xbf16>
    %cst_8 = arith.constant dense<0.000000e+00> : vector<18x128xf32>
    %27 = tpu.matmul %25, %26, %cst_8 {dimension_numbers = #tpu.dot_dimension_numbers<[1], [0], [0], [1], [0, 0, 1, 1], [], []>} : vector<18x1024xbf16>, vector<1024x128xbf16>, vector<18x128xf32> -> vector<18x128xf32>
    %c0_9 = arith.constant 0 : index
    %c0_10 = arith.constant 0 : index
    %28 = vector.load %arg5[%c0_9, %c0_10] : memref<1x128xf32, #tpu.memory_space<vmem>>, vector<1x128xf32>
    %29 = vector.broadcast %28 : vector<1x128xf32> to vector<18x128xf32>
    %30 = arith.addf %27, %29 : vector<18x128xf32>
    %cst_11 = arith.constant 0.000000e+00 : f32
    %31 = vector.broadcast %cst_11 : f32 to vector<18x128xf32>
    %32 = arith.maximumf %30, %31 : vector<18x128xf32>
    %33 = vector.extract_strided_slice %32 {offsets = [0, 0], sizes = [2, 128], strides = [1, 1]} : vector<18x128xf32> to vector<2x128xf32>
    %34 = vector.extract_strided_slice %32 {offsets = [2, 0], sizes = [2, 128], strides = [1, 1]} : vector<18x128xf32> to vector<2x128xf32>
    %35 = vector.extract_strided_slice %32 {offsets = [4, 0], sizes = [2, 128], strides = [1, 1]} : vector<18x128xf32> to vector<2x128xf32>
    %36 = vector.extract_strided_slice %32 {offsets = [6, 0], sizes = [2, 128], strides = [1, 1]} : vector<18x128xf32> to vector<2x128xf32>
    %37 = vector.extract_strided_slice %32 {offsets = [8, 0], sizes = [2, 128], strides = [1, 1]} : vector<18x128xf32> to vector<2x128xf32>
    %38 = vector.extract_strided_slice %32 {offsets = [10, 0], sizes = [2, 128], strides = [1, 1]} : vector<18x128xf32> to vector<2x128xf32>
    %39 = vector.extract_strided_slice %32 {offsets = [12, 0], sizes = [2, 128], strides = [1, 1]} : vector<18x128xf32> to vector<2x128xf32>
    %40 = vector.extract_strided_slice %32 {offsets = [14, 0], sizes = [2, 128], strides = [1, 1]} : vector<18x128xf32> to vector<2x128xf32>
    %41 = vector.extract_strided_slice %32 {offsets = [16, 0], sizes = [2, 128], strides = [1, 1]} : vector<18x128xf32> to vector<2x128xf32>
    %42 = tpu.concatenate %33, %34, %35, %36, %37, %38, %39, %40, %41 in 1 : vector<2x128xf32>, vector<2x128xf32>, vector<2x128xf32>, vector<2x128xf32>, vector<2x128xf32>, vector<2x128xf32>, vector<2x128xf32>, vector<2x128xf32>, vector<2x128xf32> -> vector<2x1152xf32>
    %43 = arith.truncf %42 : vector<2x1152xf32> to vector<2x1152xbf16>
    %c0_12 = arith.constant 0 : index
    %c0_13 = arith.constant 0 : index
    %44 = vector.load %arg6[%c0_12, %c0_13] : memref<1152x128xbf16, #tpu.memory_space<vmem>>, vector<1152x128xbf16>
    %cst_14 = arith.constant dense<0.000000e+00> : vector<2x128xf32>
    %45 = tpu.matmul %43, %44, %cst_14 {dimension_numbers = #tpu.dot_dimension_numbers<[1], [0], [0], [1], [0, 0, 1, 1], [], []>} : vector<2x1152xbf16>, vector<1152x128xbf16>, vector<2x128xf32> -> vector<2x128xf32>
    %c0_15 = arith.constant 0 : index
    %c0_16 = arith.constant 0 : index
    %46 = vector.load %arg7[%c0_15, %c0_16] : memref<1x128xf32, #tpu.memory_space<vmem>>, vector<1x128xf32>
    %47 = vector.broadcast %46 : vector<1x128xf32> to vector<2x128xf32>
    %48 = arith.addf %45, %47 : vector<2x128xf32>
    %cst_17 = arith.constant 0.000000e+00 : f32
    %49 = vector.broadcast %cst_17 : f32 to vector<2x128xf32>
    %50 = arith.maximumf %48, %49 : vector<2x128xf32>
    %51 = arith.truncf %50 : vector<2x128xf32> to vector<2x128xbf16>
    %c0_18 = arith.constant 0 : index
    %c0_19 = arith.constant 0 : index
    %52 = vector.load %arg8[%c0_18, %c0_19] : memref<128x5xbf16, #tpu.memory_space<vmem>>, vector<128x5xbf16>
    %cst_20 = arith.constant dense<0.000000e+00> : vector<2x5xf32>
    %53 = tpu.matmul %51, %52, %cst_20 {dimension_numbers = #tpu.dot_dimension_numbers<[1], [0], [0], [1], [0, 0, 1, 1], [], []>} : vector<2x128xbf16>, vector<128x5xbf16>, vector<2x5xf32> -> vector<2x5xf32>
    %c0_21 = arith.constant 0 : index
    %c0_22 = arith.constant 0 : index
    %54 = vector.load %arg9[%c0_21, %c0_22] : memref<1x5xf32, #tpu.memory_space<vmem>>, vector<1x5xf32>
    %55 = vector.broadcast %54 : vector<1x5xf32> to vector<2x5xf32>
    %56 = arith.addf %53, %55 : vector<2x5xf32>
    %cst_23 = arith.constant 0.000000e+00 : f32
    %57 = vector.broadcast %cst_23 : f32 to vector<2x5xf32>
    %58 = arith.maximumf %56, %57 : vector<2x5xf32>
    %c0_24 = arith.constant 0 : index
    %c0_25 = arith.constant 0 : index
    %59 = vector.load %arg1[%c0_24, %c0_25] : memref<2x8xbf16, #tpu.memory_space<vmem>>, vector<2x8xbf16>
    %c0_26 = arith.constant 0 : index
    %c0_27 = arith.constant 0 : index
    %60 = vector.load %arg10[%c0_26, %c0_27] : memref<8x80xbf16, #tpu.memory_space<vmem>>, vector<8x80xbf16>
    %cst_28 = arith.constant dense<0.000000e+00> : vector<2x80xf32>
    %61 = tpu.matmul %59, %60, %cst_28 {dimension_numbers = #tpu.dot_dimension_numbers<[1], [0], [0], [1], [0, 0, 1, 1], [], []>} : vector<2x8xbf16>, vector<8x80xbf16>, vector<2x80xf32> -> vector<2x80xf32>
    %c0_29 = arith.constant 0 : index
    %c0_30 = arith.constant 0 : index
    %62 = vector.load %arg11[%c0_29, %c0_30] : memref<1x80xf32, #tpu.memory_space<vmem>>, vector<1x80xf32>
    %63 = vector.broadcast %62 : vector<1x80xf32> to vector<2x80xf32>
    %64 = arith.addf %61, %63 : vector<2x80xf32>
    %cst_31 = arith.constant 0.000000e+00 : f32
    %65 = vector.broadcast %cst_31 : f32 to vector<2x80xf32>
    %66 = arith.maximumf %64, %65 : vector<2x80xf32>
    %67 = arith.truncf %66 : vector<2x80xf32> to vector<2x80xbf16>
    %c0_32 = arith.constant 0 : index
    %c0_33 = arith.constant 0 : index
    %68 = vector.load %arg12[%c0_32, %c0_33] : memref<80x100xbf16, #tpu.memory_space<vmem>>, vector<80x100xbf16>
    %cst_34 = arith.constant dense<0.000000e+00> : vector<2x100xf32>
    %69 = tpu.matmul %67, %68, %cst_34 {dimension_numbers = #tpu.dot_dimension_numbers<[1], [0], [0], [1], [0, 0, 1, 1], [], []>} : vector<2x80xbf16>, vector<80x100xbf16>, vector<2x100xf32> -> vector<2x100xf32>
    %c0_35 = arith.constant 0 : index
    %c0_36 = arith.constant 0 : index
    %70 = vector.load %arg13[%c0_35, %c0_36] : memref<1x100xf32, #tpu.memory_space<vmem>>, vector<1x100xf32>
    %71 = vector.broadcast %70 : vector<1x100xf32> to vector<2x100xf32>
    %72 = arith.addf %69, %71 : vector<2x100xf32>
    %cst_37 = arith.constant 0.000000e+00 : f32
    %73 = vector.broadcast %cst_37 : f32 to vector<2x100xf32>
    %74 = arith.maximumf %72, %73 : vector<2x100xf32>
    %75 = arith.truncf %74 : vector<2x100xf32> to vector<2x100xbf16>
    %c0_38 = arith.constant 0 : index
    %c0_39 = arith.constant 0 : index
    %76 = vector.load %arg14[%c0_38, %c0_39] : memref<100x25xbf16, #tpu.memory_space<vmem>>, vector<100x25xbf16>
    %cst_40 = arith.constant dense<0.000000e+00> : vector<2x25xf32>
    %77 = tpu.matmul %75, %76, %cst_40 {dimension_numbers = #tpu.dot_dimension_numbers<[1], [0], [0], [1], [0, 0, 1, 1], [], []>} : vector<2x100xbf16>, vector<100x25xbf16>, vector<2x25xf32> -> vector<2x25xf32>
    %c0_41 = arith.constant 0 : index
    %c0_42 = arith.constant 0 : index
    %78 = vector.load %arg15[%c0_41, %c0_42] : memref<1x25xf32, #tpu.memory_space<vmem>>, vector<1x25xf32>
    %79 = vector.broadcast %78 : vector<1x25xf32> to vector<2x25xf32>
    %80 = arith.addf %77, %79 : vector<2x25xf32>
    %cst_43 = arith.constant 0.000000e+00 : f32
    %81 = vector.broadcast %cst_43 : f32 to vector<2x25xf32>
    %82 = arith.maximumf %80, %81 : vector<2x25xf32>
    %83 = arith.truncf %82 : vector<2x25xf32> to vector<2x25xbf16>
    %c0_44 = arith.constant 0 : index
    %c0_45 = arith.constant 0 : index
    %84 = vector.load %arg16[%c0_44, %c0_45] : memref<25x5xbf16, #tpu.memory_space<vmem>>, vector<25x5xbf16>
    %cst_46 = arith.constant dense<0.000000e+00> : vector<2x5xf32>
    %85 = tpu.matmul %83, %84, %cst_46 {dimension_numbers = #tpu.dot_dimension_numbers<[1], [0], [0], [1], [0, 0, 1, 1], [], []>} : vector<2x25xbf16>, vector<25x5xbf16>, vector<2x5xf32> -> vector<2x5xf32>
    %c0_47 = arith.constant 0 : index
    %c0_48 = arith.constant 0 : index
    %86 = vector.load %arg17[%c0_47, %c0_48] : memref<1x5xf32, #tpu.memory_space<vmem>>, vector<1x5xf32>
    %87 = vector.broadcast %86 : vector<1x5xf32> to vector<2x5xf32>
    %88 = arith.addf %85, %87 : vector<2x5xf32>
    %cst_49 = arith.constant 0.000000e+00 : f32
    %89 = vector.broadcast %cst_49 : f32 to vector<2x5xf32>
    %90 = arith.maximumf %88, %89 : vector<2x5xf32>
    %91 = vector.extract_strided_slice %58 {offsets = [0, 0], sizes = [2, 4], strides = [1, 1]} : vector<2x5xf32> to vector<2x4xf32>
    %92 = vector.extract_strided_slice %90 {offsets = [0, 0], sizes = [2, 4], strides = [1, 1]} : vector<2x5xf32> to vector<2x4xf32>
    %93 = vector.extract_strided_slice %58 {offsets = [0, 4], sizes = [2, 1], strides = [1, 1]} : vector<2x5xf32> to vector<2x1xf32>
    %94 = vector.extract_strided_slice %90 {offsets = [0, 4], sizes = [2, 1], strides = [1, 1]} : vector<2x5xf32> to vector<2x1xf32>
    %95 = tpu.concatenate %91, %92, %93, %94 in 1 : vector<2x4xf32>, vector<2x4xf32>, vector<2x1xf32>, vector<2x1xf32> -> vector<2x10xf32>
    %96 = arith.truncf %95 : vector<2x10xf32> to vector<2x10xbf16>
    %c0_50 = arith.constant 0 : index
    %c0_51 = arith.constant 0 : index
    %97 = vector.load %arg18[%c0_50, %c0_51] : memref<10x8xbf16, #tpu.memory_space<vmem>>, vector<10x8xbf16>
    %cst_52 = arith.constant dense<0.000000e+00> : vector<2x8xf32>
    %98 = tpu.matmul %96, %97, %cst_52 {dimension_numbers = #tpu.dot_dimension_numbers<[1], [0], [0], [1], [0, 0, 1, 1], [], []>} : vector<2x10xbf16>, vector<10x8xbf16>, vector<2x8xf32> -> vector<2x8xf32>
    %c0_53 = arith.constant 0 : index
    %c0_54 = arith.constant 0 : index
    %99 = vector.load %arg19[%c0_53, %c0_54] : memref<1x8xf32, #tpu.memory_space<vmem>>, vector<1x8xf32>
    %100 = vector.broadcast %99 : vector<1x8xf32> to vector<2x8xf32>
    %101 = arith.addf %98, %100 : vector<2x8xf32>
    %102 = vector.extract_strided_slice %101 {offsets = [0, 0], sizes = [2, 4], strides = [1, 1]} : vector<2x8xf32> to vector<2x4xf32>
    %103 = math.tanh %102 : vector<2x4xf32>
    %104 = vector.extract_strided_slice %101 {offsets = [0, 4], sizes = [2, 4], strides = [1, 1]} : vector<2x8xf32> to vector<2x4xf32>
    %105 = tpu.concatenate %103, %104 in 1 : vector<2x4xf32>, vector<2x4xf32> -> vector<2x8xf32>
    %c0_55 = arith.constant 0 : index
    %c0_56 = arith.constant 0 : index
    %106 = vector.load %arg20[%c0_55, %c0_56] : memref<2x8xf32, #tpu.memory_space<vmem>>, vector<2x8xf32>
    tpu.vector_store %arg20[%c0_55, %c0_56], %105 {strides = array<i32>} : memref<2x8xf32, #tpu.memory_space<vmem>>, vector<2x8xf32>,
    return
  }
}

</mosaic_0001>

<llo_original>
// kernel: forward.1
$region0: #{forward.1}
  #allocation0 [shape = 'u32[]', space=smem, size = 0x4, offset = 0x4, fixed_abs, tag = 'smem constant byte address 0x4 - core index']
  #allocation1 [shape = 'u32[144,128]{1,0:T(1,128)}', space=vmem, size = 0x12000, scoped, tag = 'internal scratch']
  %s0 = inlined_call_operand.vmem [shape: bf16[288,192], index: 0, kind: input, shape index: {}]
  %s1 = inlined_call_operand.vmem [shape: bf16[2,8], index: 1, kind: input, shape index: {}]
  %s2 = inlined_call_operand.vmem [shape: bf16[192,64], index: 2, kind: input, shape index: {}]
  %s3 = inlined_call_operand.vmem [shape: f32[1,64], index: 3, kind: input, shape index: {}]
  %s4 = inlined_call_operand.vmem [shape: bf16[1024,128], index: 4, kind: input, shape index: {}]
  %s5 = inlined_call_operand.vmem [shape: f32[1,128], index: 5, kind: input, shape index: {}]
  %s6 = inlined_call_operand.vmem [shape: bf16[1152,128], index: 6, kind: input, shape index: {}]
  %s7 = inlined_call_operand.vmem [shape: f32[1,128], index: 7, kind: input, shape index: {}]
  %s8 = inlined_call_operand.vmem [shape: bf16[128,5], index: 8, kind: input, shape index: {}]
  %s9 = inlined_call_operand.vmem [shape: f32[1,5], index: 9, kind: input, shape index: {}]
  %s10 = inlined_call_operand.vmem [shape: bf16[8,80], index: 10, kind: input, shape index: {}]
  %s11 = inlined_call_operand.vmem [shape: f32[1,80], index: 11, kind: input, shape index: {}]
  %s12 = inlined_call_operand.vmem [shape: bf16[80,100], index: 12, kind: input, shape index: {}]
  %s13 = inlined_call_operand.vmem [shape: f32[1,100], index: 13, kind: input, shape index: {}]
  %s14 = inlined_call_operand.vmem [shape: bf16[100,25], index: 14, kind: input, shape index: {}]
  %s15 = inlined_call_operand.vmem [shape: f32[1,25], index: 15, kind: input, shape index: {}]
  %s16 = inlined_call_operand.vmem [shape: bf16[25,5], index: 16, kind: input, shape index: {}]
  %s17 = inlined_call_operand.vmem [shape: f32[1,5], index: 17, kind: input, shape index: {}]
  %s18 = inlined_call_operand.vmem [shape: bf16[10,8], index: 18, kind: input, shape index: {}]
  %s19 = inlined_call_operand.vmem [shape: f32[1,8], index: 19, kind: input, shape index: {}]
  %s20 = inlined_call_operand.vmem [shape: f32[2,8], index: 20, kind: output, shape index: {}]
  %s21 = sld [smem:[#allocation0]]
  $region90: #{forward.1} parent=0
    _
  %s23 = ssub.s32 1, %s21
  %s24 = scalar_select 0, %s23, %s21
  // Predicated region
  $region2: #{forward.1} parent=0 // pred_check
    _
  $region3: #{forward.1} parent=0 // pred_check_branch
    %26 = sbr.rel (0) target = $region5
  $region4: #{forward.1} parent=0 // pred_region
    _
  $region5: #{forward.1} parent=0 // pred_fallthru
    _
  // Predicated region
  $region6: #{forward.1} parent=0 // pred_check
    _
  $region7: #{forward.1} parent=0 // pred_check_branch
    %28 = sbr.rel (0) target = $region9
  $region8: #{forward.1} parent=0 // pred_region
    _
  $region9: #{forward.1} parent=0 // pred_fallthru
    _
  // Predicated region
  $region10: #{forward.1} parent=0 // pred_check
    _
  $region11: #{forward.1} parent=0 // pred_check_branch
    %30 = sbr.rel (0) target = $region13
  $region12: #{forward.1} parent=0 // pred_region
    _
  $region13: #{forward.1} parent=0 // pred_fallthru
    _
  // Predicated region
  $region14: #{forward.1} parent=0 // pred_check
    _
  $region15: #{forward.1} parent=0 // pred_check_branch
    %32 = sbr.rel (0) target = $region17
  $region16: #{forward.1} parent=0 // pred_region
    _
  $region17: #{forward.1} parent=0 // pred_fallthru
    _
  // Predicated region
  $region18: #{forward.1} parent=0 // pred_check
    _
  $region19: #{forward.1} parent=0 // pred_check_branch
    %34 = sbr.rel (0) target = $region21
  $region20: #{forward.1} parent=0 // pred_region
    _
  $region21: #{forward.1} parent=0 // pred_fallthru
    _
  // Predicated region
  $region22: #{forward.1} parent=0 // pred_check
    _
  $region23: #{forward.1} parent=0 // pred_check_branch
    %36 = sbr.rel (0) target = $region25
  $region24: #{forward.1} parent=0 // pred_region
    _
  $region25: #{forward.1} parent=0 // pred_fallthru
    _
  // Predicated region
  $region26: #{forward.1} parent=0 // pred_check
    _
  $region27: #{forward.1} parent=0 // pred_check_branch
    %38 = sbr.rel (0) target = $region29
  $region28: #{forward.1} parent=0 // pred_region
    _
  $region29: #{forward.1} parent=0 // pred_fallthru
    _
  // Predicated region
  $region30: #{forward.1} parent=0 // pred_check
    _
  $region31: #{forward.1} parent=0 // pred_check_branch
    %40 = sbr.rel (0) target = $region33
  $region32: #{forward.1} parent=0 // pred_region
    _
  $region33: #{forward.1} parent=0 // pred_fallthru
    _
  // Predicated region
  $region34: #{forward.1} parent=0 // pred_check
    _
  $region35: #{forward.1} parent=0 // pred_check_branch
    %42 = sbr.rel (0) target = $region37
  $region36: #{forward.1} parent=0 // pred_region
    _
  $region37: #{forward.1} parent=0 // pred_fallthru
    _
  // Predicated region
  $region38: #{forward.1} parent=0 // pred_check
    _
  $region39: #{forward.1} parent=0 // pred_check_branch
    %44 = sbr.rel (0) target = $region41
  $region40: #{forward.1} parent=0 // pred_region
    _
  $region41: #{forward.1} parent=0 // pred_fallthru
    _
  // Predicated region
  $region42: #{forward.1} parent=0 // pred_check
    _
  $region43: #{forward.1} parent=0 // pred_check_branch
    %46 = sbr.rel (0) target = $region45
  $region44: #{forward.1} parent=0 // pred_region
    _
  $region45: #{forward.1} parent=0 // pred_fallthru
    _
  // Predicated region
  $region46: #{forward.1} parent=0 // pred_check
    _
  $region47: #{forward.1} parent=0 // pred_check_branch
    %48 = sbr.rel (0) target = $region49
  $region48: #{forward.1} parent=0 // pred_region
    _
  $region49: #{forward.1} parent=0 // pred_fallthru
    _
  // Predicated region
  $region50: #{forward.1} parent=0 // pred_check
    _
  $region51: #{forward.1} parent=0 // pred_check_branch
    %50 = sbr.rel (0) target = $region53
  $region52: #{forward.1} parent=0 // pred_region
    _
  $region53: #{forward.1} parent=0 // pred_fallthru
    _
  // Predicated region
  $region54: #{forward.1} parent=0 // pred_check
    _
  $region55: #{forward.1} parent=0 // pred_check_branch
    %52 = sbr.rel (0) target = $region57
  $region56: #{forward.1} parent=0 // pred_region
    _
  $region57: #{forward.1} parent=0 // pred_fallthru
    _
  // Predicated region
  $region58: #{forward.1} parent=0 // pred_check
    _
  $region59: #{forward.1} parent=0 // pred_check_branch
    %54 = sbr.rel (0) target = $region61
  $region60: #{forward.1} parent=0 // pred_region
    _
  $region61: #{forward.1} parent=0 // pred_fallthru
    _
  // Predicated region
  $region62: #{forward.1} parent=0 // pred_check
    _
  $region63: #{forward.1} parent=0 // pred_check_branch
    %56 = sbr.rel (0) target = $region65
  $region64: #{forward.1} parent=0 // pred_region
    _
  $region65: #{forward.1} parent=0 // pred_fallthru
    _
  // Predicated region
  $region66: #{forward.1} parent=0 // pred_check
    _
  $region67: #{forward.1} parent=0 // pred_check_branch
    %58 = sbr.rel (0) target = $region69
  $region68: #{forward.1} parent=0 // pred_region
    _
  $region69: #{forward.1} parent=0 // pred_fallthru
    _
  // Predicated region
  $region70: #{forward.1} parent=0 // pred_check
    _
  $region71: #{forward.1} parent=0 // pred_check_branch
    %60 = sbr.rel (0) target = $region73
  $region72: #{forward.1} parent=0 // pred_region
    _
  $region73: #{forward.1} parent=0 // pred_fallthru
    _
  // Predicated region
  $region74: #{forward.1} parent=0 // pred_check
    _
  $region75: #{forward.1} parent=0 // pred_check_branch
    %62 = sbr.rel (0) target = $region77
  $region76: #{forward.1} parent=0 // pred_region
    _
  $region77: #{forward.1} parent=0 // pred_fallthru
    _
  // Predicated region
  $region78: #{forward.1} parent=0 // pred_check
    _
  $region79: #{forward.1} parent=0 // pred_check_branch
    %64 = sbr.rel (0) target = $region81
  $region80: #{forward.1} parent=0 // pred_region
    _
  $region81: #{forward.1} parent=0 // pred_fallthru
    _
  %v66 = vld [vmem:[%s0] sm:$0xff]
  %v67 = vld [vmem:[%s0 + $0x8] sm:$0xff]
  %v68 = vld [vmem:[%s0 + $0x10] sm:$0xff]
  %v69 = vld [vmem:[%s0 + $0x18] sm:$0xff]
  %v70 = vld [vmem:[%s0 + $0x20] sm:$0xff]
  %v71 = vld [vmem:[%s0 + $0x28] sm:$0xff]
  %v72 = vld [vmem:[%s0 + $0x30] sm:$0xff]
  %v73 = vld [vmem:[%s0 + $0x38] sm:$0xff]
  %v74 = vld [vmem:[%s0 + $0x40] sm:$0xff]
  %v75 = vld [vmem:[%s0 + $0x48] sm:$0xff]
  %v76 = vld [vmem:[%s0 + $0x50] sm:$0xff]
  %v77 = vld [vmem:[%s0 + $0x58] sm:$0xff]
  %v78 = vld [vmem:[%s0 + $0x60] sm:$0xff]
  %v79 = vld [vmem:[%s0 + $0x68] sm:$0xff]
  %v80 = vld [vmem:[%s0 + $0x70] sm:$0xff]
  %v81 = vld [vmem:[%s0 + $0x78] sm:$0xff]
  %v82 = vld [vmem:[%s0 + $0x80] sm:$0xff]
  %v83 = vld [vmem:[%s0 + $0x88] sm:$0xff]
  %v84 = vld [vmem:[%s0 + $0x90] sm:$0xff]
  %v85 = vld [vmem:[%s0 + $0x98] sm:$0xff]
  %v86 = vld [vmem:[%s0 + $0xa0] sm:$0xff]
  %v87 = vld [vmem:[%s0 + $0xa8] sm:$0xff]
  %v88 = vld [vmem:[%s0 + $0xb0] sm:$0xff]
  %v89 = vld [vmem:[%s0 + $0xb8] sm:$0xff]
  %v90 = vld [vmem:[%s0 + $0xc0] sm:$0xff]
  %v91 = vld [vmem:[%s0 + $0xc8] sm:$0xff]
  %v92 = vld [vmem:[%s0 + $0xd0] sm:$0xff]
  %v93 = vld [vmem:[%s0 + $0xd8] sm:$0xff]
  %v94 = vld [vmem:[%s0 + $0xe0] sm:$0xff]
  %v95 = vld [vmem:[%s0 + $0xe8] sm:$0xff]
  %v96 = vld [vmem:[%s0 + $0xf0] sm:$0xff]
  %v97 = vld [vmem:[%s0 + $0xf8] sm:$0xff]
  %v98 = vld [vmem:[%s0 + $0x100] sm:$0xff]
  %v99 = vld [vmem:[%s0 + $0x108] sm:$0xff]
  %v100 = vld [vmem:[%s0 + $0x110] sm:$0xff]
  %v101 = vld [vmem:[%s0 + $0x118] sm:$0xff]
  %v102 = vld [vmem:[%s2] sm:$0xf]
  %v103 = vld [vmem:[%s2 + $0x4] sm:$0xf]
  %v104 = vld [vmem:[%s2 + $0x8] sm:$0xf]
  %v105 = vld [vmem:[%s2 + $0xc] sm:$0xf]
  %v106 = vld [vmem:[%s2 + $0x10] sm:$0xf]
  %v107 = vld [vmem:[%s2 + $0x14] sm:$0xf]
  %v108 = vld [vmem:[%s2 + $0x18] sm:$0xf]
  %v109 = vld [vmem:[%s2 + $0x1c] sm:$0xf]
  %v110 = vld [vmem:[%s2 + $0x20] sm:$0xf]
  %v111 = vld [vmem:[%s2 + $0x24] sm:$0xf]
  %v112 = vld [vmem:[%s2 + $0x28] sm:$0xf]
  %v113 = vld [vmem:[%s2 + $0x2c] sm:$0xf]
  %v114 = vld [vmem:[%s2 + $0x30] sm:$0xf]
  %v115 = vld [vmem:[%s2 + $0x34] sm:$0xf]
  %v116 = vld [vmem:[%s2 + $0x38] sm:$0xf]
  %v117 = vld [vmem:[%s2 + $0x3c] sm:$0xf]
  %v118 = vld [vmem:[%s2 + $0x40] sm:$0xf]
  %v119 = vld [vmem:[%s2 + $0x44] sm:$0xf]
  %v120 = vld [vmem:[%s2 + $0x48] sm:$0xf]
  %v121 = vld [vmem:[%s2 + $0x4c] sm:$0xf]
  %v122 = vld [vmem:[%s2 + $0x50] sm:$0xf]
  %v123 = vld [vmem:[%s2 + $0x54] sm:$0xf]
  %v124 = vld [vmem:[%s2 + $0x58] sm:$0xf]
  %v125 = vld [vmem:[%s2 + $0x5c] sm:$0xf]
  %v126 = vld [vmem:[%s3] sm:$0x1]
  %v128 = vlaneseq
  %v129 = vshrl.u32 %v128, 7
  %v130 = vsub.s32 0, %v129
  %v131 = vrot.slane %v126, %v130
  %v169 = vunpack.c.l.b16 %v66
  %v170 = vunpack.c.h.b16 %v66
  %v171 = vunpack.c.l.b16 %v67
  %v172 = vunpack.c.h.b16 %v67
  %v173 = vunpack.c.l.b16 %v68
  %v174 = vunpack.c.h.b16 %v68
  %v175 = vunpack.c.l.b16 %v69
  %v176 = vunpack.c.h.b16 %v69
  %v177 = vunpack.c.l.b16 %v70
  %v178 = vunpack.c.h.b16 %v70
  %v179 = vunpack.c.l.b16 %v71
  %v180 = vunpack.c.h.b16 %v71
  %v181 = vunpack.c.l.b16 %v72
  %v182 = vunpack.c.h.b16 %v72
  %v183 = vunpack.c.l.b16 %v73
  %v184 = vunpack.c.h.b16 %v73
  %v185 = vunpack.c.l.b16 %v74
  %v186 = vunpack.c.h.b16 %v74
  %v187 = vunpack.c.l.b16 %v75
  %v188 = vunpack.c.h.b16 %v75
  %v189 = vunpack.c.l.b16 %v76
  %v190 = vunpack.c.h.b16 %v76
  %v191 = vunpack.c.l.b16 %v77
  %v192 = vunpack.c.h.b16 %v77
  %v193 = vunpack.c.l.b16 %v78
  %v194 = vunpack.c.h.b16 %v78
  %v195 = vunpack.c.l.b16 %v79
  %v196 = vunpack.c.h.b16 %v79
  %v197 = vunpack.c.l.b16 %v80
  %v198 = vunpack.c.h.b16 %v80
  %v199 = vunpack.c.l.b16 %v81
  %v200 = vunpack.c.h.b16 %v81
  %v201 = vunpack.c.l.b16 %v82
  %v202 = vunpack.c.h.b16 %v82
  %v203 = vunpack.c.l.b16 %v83
  %v204 = vunpack.c.h.b16 %v83
  %v205 = vunpack.c.l.b16 %v84
  %v206 = vunpack.c.h.b16 %v84
  %v207 = vunpack.c.l.b16 %v85
  %v208 = vunpack.c.h.b16 %v85
  %v209 = vunpack.c.l.b16 %v86
  %v210 = vunpack.c.h.b16 %v86
  %v211 = vunpack.c.l.b16 %v87
  %v212 = vunpack.c.h.b16 %v87
  %v213 = vunpack.c.l.b16 %v88
  %v214 = vunpack.c.h.b16 %v88
  %v215 = vunpack.c.l.b16 %v89
  %v216 = vunpack.c.h.b16 %v89
  %v217 = vunpack.c.l.b16 %v90
  %v218 = vunpack.c.h.b16 %v90
  %v219 = vunpack.c.l.b16 %v91
  %v220 = vunpack.c.h.b16 %v91
  %v221 = vunpack.c.l.b16 %v92
  %v222 = vunpack.c.h.b16 %v92
  %v223 = vunpack.c.l.b16 %v93
  %v224 = vunpack.c.h.b16 %v93
  %v225 = vunpack.c.l.b16 %v94
  %v226 = vunpack.c.h.b16 %v94
  %v227 = vunpack.c.l.b16 %v95
  %v228 = vunpack.c.h.b16 %v95
  %v229 = vunpack.c.l.b16 %v96
  %v230 = vunpack.c.h.b16 %v96
  %v231 = vunpack.c.l.b16 %v97
  %v232 = vunpack.c.h.b16 %v97
  %v233 = vunpack.c.l.b16 %v98
  %v234 = vunpack.c.h.b16 %v98
  %v235 = vunpack.c.l.b16 %v99
  %v236 = vunpack.c.h.b16 %v99
  %v237 = vunpack.c.l.b16 %v100
  %v238 = vunpack.c.h.b16 %v100
  %v239 = vunpack.c.l.b16 %v101
  %v240 = vunpack.c.h.b16 %v101
  %v241 = vpack.c.b16 %v171, %v169
  %v242 = vpack.c.b16 %v172, %v170
  %v243 = vpack.c.b16 %v175, %v173
  %v244 = vpack.c.b16 %v176, %v174
  %v245 = vpack.c.b16 %v179, %v177
  %v246 = vpack.c.b16 %v180, %v178
  %v247 = vpack.c.b16 %v183, %v181
  %v248 = vpack.c.b16 %v184, %v182
  %v249 = vpack.c.b16 %v187, %v185
  %v250 = vpack.c.b16 %v188, %v186
  %v251 = vpack.c.b16 %v191, %v189
  %v252 = vpack.c.b16 %v192, %v190
  %v253 = vpack.c.b16 %v195, %v193
  %v254 = vpack.c.b16 %v196, %v194
  %v255 = vpack.c.b16 %v199, %v197
  %v256 = vpack.c.b16 %v200, %v198
  %v257 = vpack.c.b16 %v203, %v201
  %v258 = vpack.c.b16 %v204, %v202
  %v259 = vpack.c.b16 %v207, %v205
  %v260 = vpack.c.b16 %v208, %v206
  %v261 = vpack.c.b16 %v211, %v209
  %v262 = vpack.c.b16 %v212, %v210
  %v263 = vpack.c.b16 %v215, %v213
  %v264 = vpack.c.b16 %v216, %v214
  %v265 = vpack.c.b16 %v219, %v217
  %v266 = vpack.c.b16 %v220, %v218
  %v267 = vpack.c.b16 %v223, %v221
  %v268 = vpack.c.b16 %v224, %v222
  %v269 = vpack.c.b16 %v227, %v225
  %v270 = vpack.c.b16 %v228, %v226
  %v271 = vpack.c.b16 %v231, %v229
  %v272 = vpack.c.b16 %v232, %v230
  %v273 = vpack.c.b16 %v235, %v233
  %v274 = vpack.c.b16 %v236, %v234
  %v275 = vpack.c.b16 %v239, %v237
  %v276 = vpack.c.b16 %v240, %v238
  %v319 = vunpack.c.l.b16 %v102
  %v320 = vunpack.c.l.b16 %v103
  %v321 = vunpack.c.l.b16 %v104
  %v322 = vunpack.c.l.b16 %v105
  %v323 = vunpack.c.l.b16 %v106
  %v324 = vunpack.c.l.b16 %v107
  %v325 = vunpack.c.l.b16 %v108
  %v326 = vunpack.c.l.b16 %v109
  %v327 = vunpack.c.l.b16 %v110
  %v328 = vunpack.c.l.b16 %v111
  %v329 = vunpack.c.l.b16 %v112
  %v330 = vunpack.c.l.b16 %v113
  %v331 = vunpack.c.l.b16 %v114
  %v332 = vunpack.c.l.b16 %v115
  %v333 = vunpack.c.l.b16 %v116
  %v334 = vunpack.c.l.b16 %v117
  %v335 = vunpack.c.l.b16 %v118
  %v336 = vunpack.c.l.b16 %v119
  %v337 = vunpack.c.l.b16 %v120
  %v338 = vunpack.c.l.b16 %v121
  %v339 = vunpack.c.l.b16 %v122
  %v340 = vunpack.c.l.b16 %v123
  %v341 = vunpack.c.l.b16 %v124
  %v342 = vunpack.c.l.b16 %v125
  %v343 = vpack.c.b16 %v320, %v319
  %v344 = vpack.c.b16 %v322, %v321
  %v345 = vpack.c.b16 %v324, %v323
  %v346 = vpack.c.b16 %v326, %v325
  %v347 = vpack.c.b16 %v328, %v327
  %v348 = vpack.c.b16 %v330, %v329
  %v349 = vpack.c.b16 %v332, %v331
  %v350 = vpack.c.b16 %v334, %v333
  %v351 = vpack.c.b16 %v336, %v335
  %v352 = vpack.c.b16 %v338, %v337
  %v353 = vpack.c.b16 %v340, %v339
  %v354 = vpack.c.b16 %v342, %v341
  %vm367 = vcmask 523264
  %v369 = vsel %vm367, %v242, 0
  %v372 = vsel %vm367, %v244, 0
  %v375 = vsel %vm367, %v246, 0
  %v378 = vsel %vm367, %v248, 0
  %v381 = vsel %vm367, %v250, 0
  %v384 = vsel %vm367, %v252, 0
  %v387 = vsel %vm367, %v254, 0
  %v390 = vsel %vm367, %v256, 0
  %v393 = vsel %vm367, %v258, 0
  %v396 = vsel %vm367, %v260, 0
  %v399 = vsel %vm367, %v262, 0
  %v402 = vsel %vm367, %v264, 0
  %v405 = vsel %vm367, %v266, 0
  %v408 = vsel %vm367, %v268, 0
  %v411 = vsel %vm367, %v270, 0
  %v414 = vsel %vm367, %v272, 0
  %v417 = vsel %vm367, %v274, 0
  %v420 = vsel %vm367, %v276, 0
  %422 = vmatprep.subr.bf16.mxu0 0
  %423 = vmatpush1.bf16.msra.mxu0 %v343
  %424 = vmatprep.subr.bf16.mxu0 0
  %425 = vmatpush1.bf16.msra.mxu0 %v344
  %426 = vmatprep.subr.bf16.mxu0 0
  %427 = vmatpush1.bf16.msra.mxu0 %v345
  %428 = vmatprep.subr.bf16.mxu0 0
  %429 = vmatpush1.bf16.msra.mxu0 %v346
  %430 = vmatprep.subr.bf16.mxu0 0
  %431 = vmatpush1.bf16.msra.mxu0 %v347
  %432 = vmatprep.subr.bf16.mxu0 0
  %433 = vmatpush1.bf16.msra.mxu0 %v348
  %434 = vmatprep.subr.bf16.mxu0 0
  %435 = vmatpush1.bf16.msra.mxu0 %v349
  %436 = vmatprep.subr.bf16.mxu0 0
  %437 = vmatpush1.bf16.msra.mxu0 %v350
  %438 = vmatprep.subr.bf16.mxu0 0
  %439 = vmatpush1.bf16.msra.mxu0 %v351
  %440 = vmatprep.subr.bf16.mxu0 0
  %441 = vmatpush1.bf16.msra.mxu0 %v352
  %442 = vmatprep.subr.bf16.mxu0 0
  %443 = vmatpush1.bf16.msra.mxu0 %v353
  %444 = vmatprep.subr.bf16.mxu0 0
  %445 = vmatpush1.bf16.msra.mxu0 %v354
  %446 = vmatprep.subr.bf16.mxu0 0
  %447 = vmatpush1.bf16.msra.mxu0 0
  %448 = vmatprep.subr.bf16.mxu0 0
  %449 = vmatpush1.bf16.msra.mxu0 0
  %450 = vmatprep.subr.bf16.mxu0 0
  %451 = vmatpush1.bf16.msra.mxu0 0
  %452 = vmatprep.subr.bf16.mxu0 0
  %453 = vmatpush1.bf16.msra.mxu0 0
  %454 = vmatprep.mubr.bf16.mxu0 %v369
  %455 = vmatmul.mubr.bf16.gmra.mrb[0].mxu0 %v241
  %v456 = vpop.f32.mrb[0].mxu0
  %v457 = vadd.f32 %v131, %v456
  %v458 = vpop.f32.mrb[0].mxu0
  %v459 = vpop.f32.mrb[0].mxu0
  %v460 = vadd.f32 %v131, %v459
  %v461 = vpop.f32.mrb[0].mxu0
  %462 = vmatprep.mubr.bf16.mxu0 %v372
  %463 = vmatmul.mubr.bf16.gmra.mrb[0].mxu0 %v243
  %v464 = vpop.f32.mrb[0].mxu0
  %v465 = vadd.f32 %v131, %v464
  %v466 = vpop.f32.mrb[0].mxu0
  %v467 = vpop.f32.mrb[0].mxu0
  %v468 = vadd.f32 %v131, %v467
  %v469 = vpop.f32.mrb[0].mxu0
  %470 = vmatprep.mubr.bf16.mxu0 %v375
  %471 = vmatmul.mubr.bf16.gmra.mrb[0].mxu0 %v245
  %v472 = vpop.f32.mrb[0].mxu0
  %v473 = vadd.f32 %v131, %v472
  %v474 = vpop.f32.mrb[0].mxu0
  %v475 = vpop.f32.mrb[0].mxu0
  %v476 = vadd.f32 %v131, %v475
  %v477 = vpop.f32.mrb[0].mxu0
  %478 = vmatprep.mubr.bf16.mxu0 %v378
  %479 = vmatmul.mubr.bf16.gmra.mrb[0].mxu0 %v247
  %v480 = vpop.f32.mrb[0].mxu0
  %v481 = vadd.f32 %v131, %v480
  %v482 = vpop.f32.mrb[0].mxu0
  %v483 = vpop.f32.mrb[0].mxu0
  %v484 = vadd.f32 %v131, %v483
  %v485 = vpop.f32.mrb[0].mxu0
  %486 = vmatprep.mubr.bf16.mxu0 %v381
  %487 = vmatmul.mubr.bf16.gmra.mrb[0].mxu0 %v249
  %v488 = vpop.f32.mrb[0].mxu0
  %v489 = vadd.f32 %v131, %v488
  %v490 = vpop.f32.mrb[0].mxu0
  %v491 = vpop.f32.mrb[0].mxu0
  %v492 = vadd.f32 %v131, %v491
  %v493 = vpop.f32.mrb[0].mxu0
  %494 = vmatprep.mubr.bf16.mxu0 %v384
  %495 = vmatmul.mubr.bf16.gmra.mrb[0].mxu0 %v251
  %v496 = vpop.f32.mrb[0].mxu0
  %v497 = vadd.f32 %v131, %v496
  %v498 = vpop.f32.mrb[0].mxu0
  %v499 = vpop.f32.mrb[0].mxu0
  %v500 = vadd.f32 %v131, %v499
  %v501 = vpop.f32.mrb[0].mxu0
  %502 = vmatprep.mubr.bf16.mxu0 %v387
  %503 = vmatmul.mubr.bf16.gmra.mrb[0].mxu0 %v253
  %v504 = vpop.f32.mrb[0].mxu0
  %v505 = vadd.f32 %v131, %v504
  %v506 = vpop.f32.mrb[0].mxu0
  %v507 = vpop.f32.mrb[0].mxu0
  %v508 = vadd.f32 %v131, %v507
  %v509 = vpop.f32.mrb[0].mxu0
  %510 = vmatprep.mubr.bf16.mxu0 %v390
  %511 = vmatmul.mubr.bf16.gmra.mrb[0].mxu0 %v255
  %v512 = vpop.f32.mrb[0].mxu0
  %v513 = vadd.f32 %v131, %v512
  %v514 = vpop.f32.mrb[0].mxu0
  %v515 = vpop.f32.mrb[0].mxu0
  %v516 = vadd.f32 %v131, %v515
  %v517 = vpop.f32.mrb[0].mxu0
  %518 = vmatprep.mubr.bf16.mxu0 %v393
  %519 = vmatmul.mubr.bf16.gmra.mrb[0].mxu0 %v257
  %v520 = vpop.f32.mrb[0].mxu0
  %v521 = vadd.f32 %v131, %v520
  %v522 = vpop.f32.mrb[0].mxu0
  %v523 = vpop.f32.mrb[0].mxu0
  %v524 = vadd.f32 %v131, %v523
  %v525 = vpop.f32.mrb[0].mxu0
  %526 = vmatprep.mubr.bf16.mxu0 %v396
  %527 = vmatmul.mubr.bf16.gmra.mrb[0].mxu0 %v259
  %v528 = vpop.f32.mrb[0].mxu0
  %v529 = vadd.f32 %v131, %v528
  %v530 = vpop.f32.mrb[0].mxu0
  %v531 = vpop.f32.mrb[0].mxu0
  %v532 = vadd.f32 %v131, %v531
  %v533 = vpop.f32.mrb[0].mxu0
  %534 = vmatprep.mubr.bf16.mxu0 %v399
  %535 = vmatmul.mubr.bf16.gmra.mrb[0].mxu0 %v261
  %v536 = vpop.f32.mrb[0].mxu0
  %v537 = vadd.f32 %v131, %v536
  %v538 = vpop.f32.mrb[0].mxu0
  %v539 = vpop.f32.mrb[0].mxu0
  %v540 = vadd.f32 %v131, %v539
  %v541 = vpop.f32.mrb[0].mxu0
  %542 = vmatprep.mubr.bf16.mxu0 %v402
  %543 = vmatmul.mubr.bf16.gmra.mrb[0].mxu0 %v263
  %v544 = vpop.f32.mrb[0].mxu0
  %v545 = vadd.f32 %v131, %v544
  %v546 = vpop.f32.mrb[0].mxu0
  %v547 = vpop.f32.mrb[0].mxu0
  %v548 = vadd.f32 %v131, %v547
  %v549 = vpop.f32.mrb[0].mxu0
  %550 = vmatprep.mubr.bf16.mxu0 %v405
  %551 = vmatmul.mubr.bf16.gmra.mrb[0].mxu0 %v265
  %v552 = vpop.f32.mrb[0].mxu0
  %v553 = vadd.f32 %v131, %v552
  %v554 = vpop.f32.mrb[0].mxu0
  %v555 = vpop.f32.mrb[0].mxu0
  %v556 = vadd.f32 %v131, %v555
  %v557 = vpop.f32.mrb[0].mxu0
  %558 = vmatprep.mubr.bf16.mxu0 %v408
  %559 = vmatmul.mubr.bf16.gmra.mrb[0].mxu0 %v267
  %v560 = vpop.f32.mrb[0].mxu0
  %v561 = vadd.f32 %v131, %v560
  %v562 = vpop.f32.mrb[0].mxu0
  %v563 = vpop.f32.mrb[0].mxu0
  %v564 = vadd.f32 %v131, %v563
  %v565 = vpop.f32.mrb[0].mxu0
  %566 = vmatprep.mubr.bf16.mxu0 %v411
  %567 = vmatmul.mubr.bf16.gmra.mrb[0].mxu0 %v269
  %v568 = vpop.f32.mrb[0].mxu0
  %v569 = vadd.f32 %v131, %v568
  %v570 = vpop.f32.mrb[0].mxu0
  %v571 = vpop.f32.mrb[0].mxu0
  %v572 = vadd.f32 %v131, %v571
  %v573 = vpop.f32.mrb[0].mxu0
  %574 = vmatprep.mubr.bf16.mxu0 %v414
  %575 = vmatmul.mubr.bf16.gmra.mrb[0].mxu0 %v271
  %v576 = vpop.f32.mrb[0].mxu0
  %v577 = vadd.f32 %v131, %v576
  %v578 = vpop.f32.mrb[0].mxu0
  %v579 = vpop.f32.mrb[0].mxu0
  %v580 = vadd.f32 %v131, %v579
  %v581 = vpop.f32.mrb[0].mxu0
  %582 = vmatprep.mubr.bf16.mxu0 %v417
  %583 = vmatmul.mubr.bf16.gmra.mrb[0].mxu0 %v273
  %v584 = vpop.f32.mrb[0].mxu0
  %v585 = vadd.f32 %v131, %v584
  %v586 = vpop.f32.mrb[0].mxu0
  %v587 = vpop.f32.mrb[0].mxu0
  %v588 = vadd.f32 %v131, %v587
  %v589 = vpop.f32.mrb[0].mxu0
  %590 = vmatprep.mubr.bf16.mxu0 %v420
  %591 = vmatmul.mubr.bf16.gmra.mrb[0].mxu0 %v275
  %v592 = vpop.f32.mrb[0].mxu0
  %v593 = vadd.f32 %v131, %v592
  %v594 = vpop.f32.mrb[0].mxu0
  %v595 = vpop.f32.mrb[0].mxu0
  %v596 = vadd.f32 %v131, %v595
  %v597 = vpop.f32.mrb[0].mxu0
  %598 = vdwg.mxu0
  %v599 = vmax.f32 %v457, 0.0
  %v600 = vmax.f32 %v460, 0.0
  %v601 = vmax.f32 %v465, 0.0
  %v602 = vmax.f32 %v468, 0.0
  %v603 = vmax.f32 %v473, 0.0
  %v604 = vmax.f32 %v476, 0.0
  %v605 = vmax.f32 %v481, 0.0
  %v606 = vmax.f32 %v484, 0.0
  %v607 = vmax.f32 %v489, 0.0
  %v608 = vmax.f32 %v492, 0.0
  %v609 = vmax.f32 %v497, 0.0
  %v610 = vmax.f32 %v500, 0.0
  %v611 = vmax.f32 %v505, 0.0
  %v612 = vmax.f32 %v508, 0.0
  %v613 = vmax.f32 %v513, 0.0
  %v614 = vmax.f32 %v516, 0.0
  %v615 = vmax.f32 %v521, 0.0
  %v616 = vmax.f32 %v524, 0.0
  %v617 = vmax.f32 %v529, 0.0
  %v618 = vmax.f32 %v532, 0.0
  %v619 = vmax.f32 %v537, 0.0
  %v620 = vmax.f32 %v540, 0.0
  %v621 = vmax.f32 %v545, 0.0
  %v622 = vmax.f32 %v548, 0.0
  %v623 = vmax.f32 %v553, 0.0
  %v624 = vmax.f32 %v556, 0.0
  %v625 = vmax.f32 %v561, 0.0
  %v626 = vmax.f32 %v564, 0.0
  %v627 = vmax.f32 %v569, 0.0
  %v628 = vmax.f32 %v572, 0.0
  %v629 = vmax.f32 %v577, 0.0
  %v630 = vmax.f32 %v580, 0.0
  %v631 = vmax.f32 %v585, 0.0
  %v632 = vmax.f32 %v588, 0.0
  %v633 = vmax.f32 %v593, 0.0
  %v634 = vmax.f32 %v596, 0.0
  %vm638 = vcmask 1045504
  %v639 = vrot.slane %v601, 2
  %v640 = vrot.slane %v602, 2
  %v641 = vsel %vm638, %v639, %v640
  %v642 = vrot.slane %v603, 2
  %v643 = vsel %vm638, %v640, %v642
  %644 = vrot.lane.b32.xlu0 %v641, 64
  %v645 = vpop.permute.xlu0 %644
  %646 = vrot.lane.b32.xlu0 %v643, 64
  %v647 = vpop.permute.xlu0 %646
  %648 = vrot.lane.b32.xlu0 %v642, 64
  %v649 = vpop.permute.xlu0 %648
  %vm655 = vcmask 1043456
  %v656 = vrot.slane %v603, 4
  %v657 = vrot.slane %v604, 4
  %v658 = vsel %vm655, %v656, %v657
  %v659 = vrot.slane %v605, 4
  %v660 = vsel %vm655, %v657, %v659
  %vm666 = vcmask 1041408
  %v667 = vrot.slane %v605, 6
  %v668 = vrot.slane %v606, 6
  %v669 = vsel %vm666, %v667, %v668
  %v670 = vrot.slane %v607, 6
  %v671 = vsel %vm666, %v668, %v670
  %672 = vrot.lane.b32.xlu0 %v669, 64
  %v673 = vpop.permute.xlu0 %672
  %674 = vrot.lane.b32.xlu0 %v671, 64
  %v675 = vpop.permute.xlu0 %674
  %676 = vrot.lane.b32.xlu0 %v670, 64
  %v677 = vpop.permute.xlu0 %676
  %v684 = vrot.slane %v610, 2
  %v685 = vrot.slane %v611, 2
  %v686 = vsel %vm638, %v684, %v685
  %v687 = vrot.slane %v612, 2
  %v688 = vsel %vm638, %v685, %v687
  %689 = vrot.lane.b32.xlu0 %v686, 64
  %v690 = vpop.permute.xlu0 %689
  %691 = vrot.lane.b32.xlu0 %v688, 64
  %v692 = vpop.permute.xlu0 %691
  %693 = vrot.lane.b32.xlu0 %v687, 64
  %v694 = vpop.permute.xlu0 %693
  %v700 = vrot.slane %v612, 4
  %v701 = vrot.slane %v613, 4
  %v702 = vsel %vm655, %v700, %v701
  %v703 = vrot.slane %v614, 4
  %v704 = vsel %vm655, %v701, %v703
  %v710 = vrot.slane %v614, 6
  %v711 = vrot.slane %v615, 6
  %v712 = vsel %vm666, %v710, %v711
  %v713 = vrot.slane %v616, 6
  %v714 = vsel %vm666, %v711, %v713
  %715 = vrot.lane.b32.xlu0 %v712, 64
  %v716 = vpop.permute.xlu0 %715
  %717 = vrot.lane.b32.xlu0 %v714, 64
  %v718 = vpop.permute.xlu0 %717
  %719 = vrot.lane.b32.xlu0 %v713, 64
  %v720 = vpop.permute.xlu0 %719
  %v727 = vrot.slane %v619, 2
  %v728 = vrot.slane %v620, 2
  %v729 = vsel %vm638, %v727, %v728
  %v730 = vrot.slane %v621, 2
  %v731 = vsel %vm638, %v728, %v730
  %732 = vrot.lane.b32.xlu0 %v729, 64
  %v733 = vpop.permute.xlu0 %732
  %734 = vrot.lane.b32.xlu0 %v731, 64
  %v735 = vpop.permute.xlu0 %734
  %736 = vrot.lane.b32.xlu0 %v730, 64
  %v737 = vpop.permute.xlu0 %736
  %v743 = vrot.slane %v621, 4
  %v744 = vrot.slane %v622, 4
  %v745 = vsel %vm655, %v743, %v744
  %v746 = vrot.slane %v623, 4
  %v747 = vsel %vm655, %v744, %v746
  %v753 = vrot.slane %v623, 6
  %v754 = vrot.slane %v624, 6
  %v755 = vsel %vm666, %v753, %v754
  %v756 = vrot.slane %v625, 6
  %v757 = vsel %vm666, %v754, %v756
  %758 = vrot.lane.b32.xlu0 %v755, 64
  %v759 = vpop.permute.xlu0 %758
  %760 = vrot.lane.b32.xlu0 %v757, 64
  %v761 = vpop.permute.xlu0 %760
  %762 = vrot.lane.b32.xlu0 %v756, 64
  %v763 = vpop.permute.xlu0 %762
  %v770 = vrot.slane %v628, 2
  %v771 = vrot.slane %v629, 2
  %v772 = vsel %vm638, %v770, %v771
  %v773 = vrot.slane %v630, 2
  %v774 = vsel %vm638, %v771, %v773
  %775 = vrot.lane.b32.xlu0 %v772, 64
  %v776 = vpop.permute.xlu0 %775
  %777 = vrot.lane.b32.xlu0 %v774, 64
  %v778 = vpop.permute.xlu0 %777
  %779 = vrot.lane.b32.xlu0 %v773, 64
  %v780 = vpop.permute.xlu0 %779
  %v786 = vrot.slane %v630, 4
  %v787 = vrot.slane %v631, 4
  %v788 = vsel %vm655, %v786, %v787
  %v789 = vrot.slane %v632, 4
  %v790 = vsel %vm655, %v787, %v789
  %v796 = vrot.slane %v632, 6
  %v797 = vrot.slane %v633, 6
  %v798 = vsel %vm666, %v796, %v797
  %v799 = vrot.slane %v634, 6
  %v800 = vsel %vm666, %v797, %v799
  %801 = vrot.lane.b32.xlu0 %v798, 64
  %v802 = vpop.permute.xlu0 %801
  %803 = vrot.lane.b32.xlu0 %v800, 64
  %v804 = vpop.permute.xlu0 %803
  %805 = vrot.lane.b32.xlu0 %v799, 64
  %v806 = vpop.permute.xlu0 %805
  %v810 = vsel %vm367, %v599, %v645
  %v811 = vsel %vm367, %v600, %v647
  %v812 = vsel %vm367, %v601, %v649
  %v813 = vsel %vm367, %v658, %v673
  %v814 = vsel %vm367, %v660, %v675
  %v815 = vsel %vm367, %v659, %v677
  %v816 = vsel %vm367, %v608, %v690
  %v817 = vsel %vm367, %v609, %v692
  %v818 = vsel %vm367, %v610, %v694
  %v819 = vsel %vm367, %v702, %v716
  %v820 = vsel %vm367, %v704, %v718
  %v821 = vsel %vm367, %v703, %v720
  %v822 = vsel %vm367, %v617, %v733
  %v823 = vsel %vm367, %v618, %v735
  %v824 = vsel %vm367, %v619, %v737
  %v825 = vsel %vm367, %v745, %v759
  %v826 = vsel %vm367, %v747, %v761
  %v827 = vsel %vm367, %v746, %v763
  %v828 = vsel %vm367, %v626, %v776
  %v829 = vsel %vm367, %v627, %v778
  %v830 = vsel %vm367, %v628, %v780
  %v831 = vsel %vm367, %v788, %v802
  %v832 = vsel %vm367, %v790, %v804
  %v833 = vsel %vm367, %v789, %v806
  %v834 = vpack.c.bf16 %v811, %v810
  %v835 = vpack.c.bf16 %v814, %v813
  %v836 = vpack.c.bf16 %v817, %v816
  %v837 = vpack.c.bf16 %v820, %v819
  %v838 = vpack.c.bf16 %v823, %v822
  %v839 = vpack.c.bf16 %v826, %v825
  %v840 = vpack.c.bf16 %v829, %v828
  %v841 = vpack.c.bf16 %v832, %v831
  %v842 = vpack.c.bf16 %v812, %v812
  %v843 = vpack.c.bf16 %v815, %v815
  %v844 = vpack.c.bf16 %v818, %v818
  %v845 = vpack.c.bf16 %v821, %v821
  %v846 = vpack.c.bf16 %v824, %v824
  %v847 = vpack.c.bf16 %v827, %v827
  %v848 = vpack.c.bf16 %v830, %v830
  %v849 = vpack.c.bf16 %v833, %v833
  %v850 = vld [vmem:[%s4] sm:$0xf]
  %v851 = vld [vmem:[%s4 + $0x4] sm:$0xf]
  %v852 = vld [vmem:[%s4 + $0x8] sm:$0xf]
  %v853 = vld [vmem:[%s4 + $0xc] sm:$0xf]
  %v854 = vld [vmem:[%s4 + $0x10] sm:$0xf]
  %v855 = vld [vmem:[%s4 + $0x14] sm:$0xf]
  %v856 = vld [vmem:[%s4 + $0x18] sm:$0xf]
  %v857 = vld [vmem:[%s4 + $0x1c] sm:$0xf]
  %v858 = vld [vmem:[%s4 + $0x20] sm:$0xf]
  %v859 = vld [vmem:[%s4 + $0x24] sm:$0xf]
  %v860 = vld [vmem:[%s4 + $0x28] sm:$0xf]
  %v861 = vld [vmem:[%s4 + $0x2c] sm:$0xf]
  %v862 = vld [vmem:[%s4 + $0x30] sm:$0xf]
  %v863 = vld [vmem:[%s4 + $0x34] sm:$0xf]
  %v864 = vld [vmem:[%s4 + $0x38] sm:$0xf]
  %v865 = vld [vmem:[%s4 + $0x3c] sm:$0xf]
  %v866 = vld [vmem:[%s4 + $0x40] sm:$0xf]
  %v867 = vld [vmem:[%s4 + $0x44] sm:$0xf]
  %v868 = vld [vmem:[%s4 + $0x48] sm:$0xf]
  %v869 = vld [vmem:[%s4 + $0x4c] sm:$0xf]
  %v870 = vld [vmem:[%s4 + $0x50] sm:$0xf]
  %v871 = vld [vmem:[%s4 + $0x54] sm:$0xf]
  %v872 = vld [vmem:[%s4 + $0x58] sm:$0xf]
  %v873 = vld [vmem:[%s4 + $0x5c] sm:$0xf]
  %v874 = vld [vmem:[%s4 + $0x60] sm:$0xf]
  %v875 = vld [vmem:[%s4 + $0x64] sm:$0xf]
  %v876 = vld [vmem:[%s4 + $0x68] sm:$0xf]
  %v877 = vld [vmem:[%s4 + $0x6c] sm:$0xf]
  %v878 = vld [vmem:[%s4 + $0x70] sm:$0xf]
  %v879 = vld [vmem:[%s4 + $0x74] sm:$0xf]
  %v880 = vld [vmem:[%s4 + $0x78] sm:$0xf]
  %v881 = vld [vmem:[%s4 + $0x7c] sm:$0xf]
  %v882 = vld [vmem:[%s4 + $0x80] sm:$0xf]
  %v883 = vld [vmem:[%s4 + $0x84] sm:$0xf]
  %v884 = vld [vmem:[%s4 + $0x88] sm:$0xf]
  %v885 = vld [vmem:[%s4 + $0x8c] sm:$0xf]
  %v886 = vld [vmem:[%s4 + $0x90] sm:$0xf]
  %v887 = vld [vmem:[%s4 + $0x94] sm:$0xf]
  %v888 = vld [vmem:[%s4 + $0x98] sm:$0xf]
  %v889 = vld [vmem:[%s4 + $0x9c] sm:$0xf]
  %v890 = vld [vmem:[%s4 + $0xa0] sm:$0xf]
  %v891 = vld [vmem:[%s4 + $0xa4] sm:$0xf]
  %v892 = vld [vmem:[%s4 + $0xa8] sm:$0xf]
  %v893 = vld [vmem:[%s4 + $0xac] sm:$0xf]
  %v894 = vld [vmem:[%s4 + $0xb0] sm:$0xf]
  %v895 = vld [vmem:[%s4 + $0xb4] sm:$0xf]
  %v896 = vld [vmem:[%s4 + $0xb8] sm:$0xf]
  %v897 = vld [vmem:[%s4 + $0xbc] sm:$0xf]
  %v898 = vld [vmem:[%s4 + $0xc0] sm:$0xf]
  %v899 = vld [vmem:[%s4 + $0xc4] sm:$0xf]
  %v900 = vld [vmem:[%s4 + $0xc8] sm:$0xf]
  %v901 = vld [vmem:[%s4 + $0xcc] sm:$0xf]
  %v902 = vld [vmem:[%s4 + $0xd0] sm:$0xf]
  %v903 = vld [vmem:[%s4 + $0xd4] sm:$0xf]
  %v904 = vld [vmem:[%s4 + $0xd8] sm:$0xf]
  %v905 = vld [vmem:[%s4 + $0xdc] sm:$0xf]
  %v906 = vld [vmem:[%s4 + $0xe0] sm:$0xf]
  %v907 = vld [vmem:[%s4 + $0xe4] sm:$0xf]
  %v908 = vld [vmem:[%s4 + $0xe8] sm:$0xf]
  %v909 = vld [vmem:[%s4 + $0xec] sm:$0xf]
  %v910 = vld [vmem:[%s4 + $0xf0] sm:$0xf]
  %v911 = vld [vmem:[%s4 + $0xf4] sm:$0xf]
  %v912 = vld [vmem:[%s4 + $0xf8] sm:$0xf]
  %v913 = vld [vmem:[%s4 + $0xfc] sm:$0xf]
  %v914 = vld [vmem:[%s4 + $0x100] sm:$0xf]
  %v915 = vld [vmem:[%s4 + $0x104] sm:$0xf]
  %v916 = vld [vmem:[%s4 + $0x108] sm:$0xf]
  %v917 = vld [vmem:[%s4 + $0x10c] sm:$0xf]
  %v918 = vld [vmem:[%s4 + $0x110] sm:$0xf]
  %v919 = vld [vmem:[%s4 + $0x114] sm:$0xf]
  %v920 = vld [vmem:[%s4 + $0x118] sm:$0xf]
  %v921 = vld [vmem:[%s4 + $0x11c] sm:$0xf]
  %v922 = vld [vmem:[%s4 + $0x120] sm:$0xf]
  %v923 = vld [vmem:[%s4 + $0x124] sm:$0xf]
  %v924 = vld [vmem:[%s4 + $0x128] sm:$0xf]
  %v925 = vld [vmem:[%s4 + $0x12c] sm:$0xf]
  %v926 = vld [vmem:[%s4 + $0x130] sm:$0xf]
  %v927 = vld [vmem:[%s4 + $0x134] sm:$0xf]
  %v928 = vld [vmem:[%s4 + $0x138] sm:$0xf]
  %v929 = vld [vmem:[%s4 + $0x13c] sm:$0xf]
  %v930 = vld [vmem:[%s4 + $0x140] sm:$0xf]
  %v931 = vld [vmem:[%s4 + $0x144] sm:$0xf]
  %v932 = vld [vmem:[%s4 + $0x148] sm:$0xf]
  %v933 = vld [vmem:[%s4 + $0x14c] sm:$0xf]
  %v934 = vld [vmem:[%s4 + $0x150] sm:$0xf]
  %v935 = vld [vmem:[%s4 + $0x154] sm:$0xf]
  %v936 = vld [vmem:[%s4 + $0x158] sm:$0xf]
  %v937 = vld [vmem:[%s4 + $0x15c] sm:$0xf]
  %v938 = vld [vmem:[%s4 + $0x160] sm:$0xf]
  %v939 = vld [vmem:[%s4 + $0x164] sm:$0xf]
  %v940 = vld [vmem:[%s4 + $0x168] sm:$0xf]
  %v941 = vld [vmem:[%s4 + $0x16c] sm:$0xf]
  %v942 = vld [vmem:[%s4 + $0x170] sm:$0xf]
  %v943 = vld [vmem:[%s4 + $0x174] sm:$0xf]
  %v944 = vld [vmem:[%s4 + $0x178] sm:$0xf]
  %v945 = vld [vmem:[%s4 + $0x17c] sm:$0xf]
  %v946 = vld [vmem:[%s4 + $0x180] sm:$0xf]
  %v947 = vld [vmem:[%s4 + $0x184] sm:$0xf]
  %v948 = vld [vmem:[%s4 + $0x188] sm:$0xf]
  %v949 = vld [vmem:[%s4 + $0x18c] sm:$0xf]
  %v950 = vld [vmem:[%s4 + $0x190] sm:$0xf]
  %v951 = vld [vmem:[%s4 + $0x194] sm:$0xf]
  %v952 = vld [vmem:[%s4 + $0x198] sm:$0xf]
  %v953 = vld [vmem:[%s4 + $0x19c] sm:$0xf]
  %v954 = vld [vmem:[%s4 + $0x1a0] sm:$0xf]
  %v955 = vld [vmem:[%s4 + $0x1a4] sm:$0xf]
  %v956 = vld [vmem:[%s4 + $0x1a8] sm:$0xf]
  %v957 = vld [vmem:[%s4 + $0x1ac] sm:$0xf]
  %v958 = vld [vmem:[%s4 + $0x1b0] sm:$0xf]
  %v959 = vld [vmem:[%s4 + $0x1b4] sm:$0xf]
  %v960 = vld [vmem:[%s4 + $0x1b8] sm:$0xf]
  %v961 = vld [vmem:[%s4 + $0x1bc] sm:$0xf]
  %v962 = vld [vmem:[%s4 + $0x1c0] sm:$0xf]
  %v963 = vld [vmem:[%s4 + $0x1c4] sm:$0xf]
  %v964 = vld [vmem:[%s4 + $0x1c8] sm:$0xf]
  %v965 = vld [vmem:[%s4 + $0x1cc] sm:$0xf]
  %v966 = vld [vmem:[%s4 + $0x1d0] sm:$0xf]
  %v967 = vld [vmem:[%s4 + $0x1d4] sm:$0xf]
  %v968 = vld [vmem:[%s4 + $0x1d8] sm:$0xf]
  %v969 = vld [vmem:[%s4 + $0x1dc] sm:$0xf]
  %v970 = vld [vmem:[%s4 + $0x1e0] sm:$0xf]
  %v971 = vld [vmem:[%s4 + $0x1e4] sm:$0xf]
  %v972 = vld [vmem:[%s4 + $0x1e8] sm:$0xf]
  %v973 = vld [vmem:[%s4 + $0x1ec] sm:$0xf]
  %v974 = vld [vmem:[%s4 + $0x1f0] sm:$0xf]
  %v975 = vld [vmem:[%s4 + $0x1f4] sm:$0xf]
  %v976 = vld [vmem:[%s4 + $0x1f8] sm:$0xf]
  %v977 = vld [vmem:[%s4 + $0x1fc] sm:$0xf]
  %v978 = vld [vmem:[%s5] sm:$0x1]
  %v980 = vlaneseq
  %v981 = vshrl.u32 %v980, 7
  %v982 = vsub.s32 0, %v981
  %v983 = vrot.slane %v978, %v982
  %v1113 = vunpack.c.l.b16 %v850
  %v1114 = vunpack.c.l.b16 %v851
  %v1115 = vunpack.c.l.b16 %v852
  %v1116 = vunpack.c.l.b16 %v853
  %v1117 = vunpack.c.l.b16 %v854
  %v1118 = vunpack.c.l.b16 %v855
  %v1119 = vunpack.c.l.b16 %v856
  %v1120 = vunpack.c.l.b16 %v857
  %v1121 = vunpack.c.l.b16 %v858
  %v1122 = vunpack.c.l.b16 %v859
  %v1123 = vunpack.c.l.b16 %v860
  %v1124 = vunpack.c.l.b16 %v861
  %v1125 = vunpack.c.l.b16 %v862
  %v1126 = vunpack.c.l.b16 %v863
  %v1127 = vunpack.c.l.b16 %v864
  %v1128 = vunpack.c.l.b16 %v865
  %v1129 = vunpack.c.l.b16 %v866
  %v1130 = vunpack.c.l.b16 %v867
  %v1131 = vunpack.c.l.b16 %v868
  %v1132 = vunpack.c.l.b16 %v869
  %v1133 = vunpack.c.l.b16 %v870
  %v1134 = vunpack.c.l.b16 %v871
  %v1135 = vunpack.c.l.b16 %v872
  %v1136 = vunpack.c.l.b16 %v873
  %v1137 = vunpack.c.l.b16 %v874
  %v1138 = vunpack.c.l.b16 %v875
  %v1139 = vunpack.c.l.b16 %v876
  %v1140 = vunpack.c.l.b16 %v877
  %v1141 = vunpack.c.l.b16 %v878
  %v1142 = vunpack.c.l.b16 %v879
  %v1143 = vunpack.c.l.b16 %v880
  %v1144 = vunpack.c.l.b16 %v881
  %v1145 = vunpack.c.l.b16 %v882
  %v1146 = vunpack.c.l.b16 %v883
  %v1147 = vunpack.c.l.b16 %v884
  %v1148 = vunpack.c.l.b16 %v885
  %v1149 = vunpack.c.l.b16 %v886
  %v1150 = vunpack.c.l.b16 %v887
  %v1151 = vunpack.c.l.b16 %v888
  %v1152 = vunpack.c.l.b16 %v889
  %v1153 = vunpack.c.l.b16 %v890
  %v1154 = vunpack.c.l.b16 %v891
  %v1155 = vunpack.c.l.b16 %v892
  %v1156 = vunpack.c.l.b16 %v893
  %v1157 = vunpack.c.l.b16 %v894
  %v1158 = vunpack.c.l.b16 %v895
  %v1159 = vunpack.c.l.b16 %v896
  %v1160 = vunpack.c.l.b16 %v897
  %v1161 = vunpack.c.l.b16 %v898
  %v1162 = vunpack.c.l.b16 %v899
  %v1163 = vunpack.c.l.b16 %v900
  %v1164 = vunpack.c.l.b16 %v901
  %v1165 = vunpack.c.l.b16 %v902
  %v1166 = vunpack.c.l.b16 %v903
  %v1167 = vunpack.c.l.b16 %v904
  %v1168 = vunpack.c.l.b16 %v905
  %v1169 = vunpack.c.l.b16 %v906
  %v1170 = vunpack.c.l.b16 %v907
  %v1171 = vunpack.c.l.b16 %v908
  %v1172 = vunpack.c.l.b16 %v909
  %v1173 = vunpack.c.l.b16 %v910
  %v1174 = vunpack.c.l.b16 %v911
  %v1175 = vunpack.c.l.b16 %v912
  %v1176 = vunpack.c.l.b16 %v913
  %v1177 = vunpack.c.l.b16 %v914
  %v1178 = vunpack.c.l.b16 %v915
  %v1179 = vunpack.c.l.b16 %v916
  %v1180 = vunpack.c.l.b16 %v917
  %v1181 = vunpack.c.l.b16 %v918
  %v1182 = vunpack.c.l.b16 %v919
  %v1183 = vunpack.c.l.b16 %v920
  %v1184 = vunpack.c.l.b16 %v921
  %v1185 = vunpack.c.l.b16 %v922
  %v1186 = vunpack.c.l.b16 %v923
  %v1187 = vunpack.c.l.b16 %v924
  %v1188 = vunpack.c.l.b16 %v925
  %v1189 = vunpack.c.l.b16 %v926
  %v1190 = vunpack.c.l.b16 %v927
  %v1191 = vunpack.c.l.b16 %v928
  %v1192 = vunpack.c.l.b16 %v929
  %v1193 = vunpack.c.l.b16 %v930
  %v1194 = vunpack.c.l.b16 %v931
  %v1195 = vunpack.c.l.b16 %v932
  %v1196 = vunpack.c.l.b16 %v933
  %v1197 = vunpack.c.l.b16 %v934
  %v1198 = vunpack.c.l.b16 %v935
  %v1199 = vunpack.c.l.b16 %v936
  %v1200 = vunpack.c.l.b16 %v937
  %v1201 = vunpack.c.l.b16 %v938
  %v1202 = vunpack.c.l.b16 %v939
  %v1203 = vunpack.c.l.b16 %v940
  %v1204 = vunpack.c.l.b16 %v941
  %v1205 = vunpack.c.l.b16 %v942
  %v1206 = vunpack.c.l.b16 %v943
  %v1207 = vunpack.c.l.b16 %v944
  %v1208 = vunpack.c.l.b16 %v945
  %v1209 = vunpack.c.l.b16 %v946
  %v1210 = vunpack.c.l.b16 %v947
  %v1211 = vunpack.c.l.b16 %v948
  %v1212 = vunpack.c.l.b16 %v949
  %v1213 = vunpack.c.l.b16 %v950
  %v1214 = vunpack.c.l.b16 %v951
  %v1215 = vunpack.c.l.b16 %v952
  %v1216 = vunpack.c.l.b16 %v953
  %v1217 = vunpack.c.l.b16 %v954
  %v1218 = vunpack.c.l.b16 %v955
  %v1219 = vunpack.c.l.b16 %v956
  %v1220 = vunpack.c.l.b16 %v957
  %v1221 = vunpack.c.l.b16 %v958
  %v1222 = vunpack.c.l.b16 %v959
  %v1223 = vunpack.c.l.b16 %v960
  %v1224 = vunpack.c.l.b16 %v961
  %v1225 = vunpack.c.l.b16 %v962
  %v1226 = vunpack.c.l.b16 %v963
  %v1227 = vunpack.c.l.b16 %v964
  %v1228 = vunpack.c.l.b16 %v965
  %v1229 = vunpack.c.l.b16 %v966
  %v1230 = vunpack.c.l.b16 %v967
  %v1231 = vunpack.c.l.b16 %v968
  %v1232 = vunpack.c.l.b16 %v969
  %v1233 = vunpack.c.l.b16 %v970
  %v1234 = vunpack.c.l.b16 %v971
  %v1235 = vunpack.c.l.b16 %v972
  %v1236 = vunpack.c.l.b16 %v973
  %v1237 = vunpack.c.l.b16 %v974
  %v1238 = vunpack.c.l.b16 %v975
  %v1239 = vunpack.c.l.b16 %v976
  %v1240 = vunpack.c.l.b16 %v977
  %v1241 = vpack.c.b16 %v1114, %v1113
  %v1242 = vpack.c.b16 %v1116, %v1115
  %v1243 = vpack.c.b16 %v1118, %v1117
  %v1244 = vpack.c.b16 %v1120, %v1119
  %v1245 = vpack.c.b16 %v1122, %v1121
  %v1246 = vpack.c.b16 %v1124, %v1123
  %v1247 = vpack.c.b16 %v1126, %v1125
  %v1248 = vpack.c.b16 %v1128, %v1127
  %v1249 = vpack.c.b16 %v1130, %v1129
  %v1250 = vpack.c.b16 %v1132, %v1131
  %v1251 = vpack.c.b16 %v1134, %v1133
  %v1252 = vpack.c.b16 %v1136, %v1135
  %v1253 = vpack.c.b16 %v1138, %v1137
  %v1254 = vpack.c.b16 %v1140, %v1139
  %v1255 = vpack.c.b16 %v1142, %v1141
  %v1256 = vpack.c.b16 %v1144, %v1143
  %v1257 = vpack.c.b16 %v1146, %v1145
  %v1258 = vpack.c.b16 %v1148, %v1147
  %v1259 = vpack.c.b16 %v1150, %v1149
  %v1260 = vpack.c.b16 %v1152, %v1151
  %v1261 = vpack.c.b16 %v1154, %v1153
  %v1262 = vpack.c.b16 %v1156, %v1155
  %v1263 = vpack.c.b16 %v1158, %v1157
  %v1264 = vpack.c.b16 %v1160, %v1159
  %v1265 = vpack.c.b16 %v1162, %v1161
  %v1266 = vpack.c.b16 %v1164, %v1163
  %v1267 = vpack.c.b16 %v1166, %v1165
  %v1268 = vpack.c.b16 %v1168, %v1167
  %v1269 = vpack.c.b16 %v1170, %v1169
  %v1270 = vpack.c.b16 %v1172, %v1171
  %v1271 = vpack.c.b16 %v1174, %v1173
  %v1272 = vpack.c.b16 %v1176, %v1175
  %v1273 = vpack.c.b16 %v1178, %v1177
  %v1274 = vpack.c.b16 %v1180, %v1179
  %v1275 = vpack.c.b16 %v1182, %v1181
  %v1276 = vpack.c.b16 %v1184, %v1183
  %v1277 = vpack.c.b16 %v1186, %v1185
  %v1278 = vpack.c.b16 %v1188, %v1187
  %v1279 = vpack.c.b16 %v1190, %v1189
  %v1280 = vpack.c.b16 %v1192, %v1191
  %v1281 = vpack.c.b16 %v1194, %v1193
  %v1282 = vpack.c.b16 %v1196, %v1195
  %v1283 = vpack.c.b16 %v1198, %v1197
  %v1284 = vpack.c.b16 %v1200, %v1199
  %v1285 = vpack.c.b16 %v1202, %v1201
  %v1286 = vpack.c.b16 %v1204, %v1203
  %v1287 = vpack.c.b16 %v1206, %v1205
  %v1288 = vpack.c.b16 %v1208, %v1207
  %v1289 = vpack.c.b16 %v1210, %v1209
  %v1290 = vpack.c.b16 %v1212, %v1211
  %v1291 = vpack.c.b16 %v1214, %v1213
  %v1292 = vpack.c.b16 %v1216, %v1215
  %v1293 = vpack.c.b16 %v1218, %v1217
  %v1294 = vpack.c.b16 %v1220, %v1219
  %v1295 = vpack.c.b16 %v1222, %v1221
  %v1296 = vpack.c.b16 %v1224, %v1223
  %v1297 = vpack.c.b16 %v1226, %v1225
  %v1298 = vpack.c.b16 %v1228, %v1227
  %v1299 = vpack.c.b16 %v1230, %v1229
  %v1300 = vpack.c.b16 %v1232, %v1231
  %v1301 = vpack.c.b16 %v1234, %v1233
  %v1302 = vpack.c.b16 %v1236, %v1235
  %v1303 = vpack.c.b16 %v1238, %v1237
  %v1304 = vpack.c.b16 %v1240, %v1239
  %1369 = vmatprep.subr.bf16.mxu0 0
  %1370 = vmatpush1.bf16.msra.mxu0 %v1241
  %1371 = vmatprep.subr.bf16.mxu0 0
  %1372 = vmatpush1.bf16.msra.mxu0 %v1242
  %1373 = vmatprep.subr.bf16.mxu0 0
  %1374 = vmatpush1.bf16.msra.mxu0 %v1243
  %1375 = vmatprep.subr.bf16.mxu0 0
  %1376 = vmatpush1.bf16.msra.mxu0 %v1244
  %1377 = vmatprep.subr.bf16.mxu0 0
  %1378 = vmatpush1.bf16.msra.mxu0 %v1245
  %1379 = vmatprep.subr.bf16.mxu0 0
  %1380 = vmatpush1.bf16.msra.mxu0 %v1246
  %1381 = vmatprep.subr.bf16.mxu0 0
  %1382 = vmatpush1.bf16.msra.mxu0 %v1247
  %1383 = vmatprep.subr.bf16.mxu0 0
  %1384 = vmatpush1.bf16.msra.mxu0 %v1248
  %1385 = vmatprep.subr.bf16.mxu0 0
  %1386 = vmatpush1.bf16.msra.mxu0 %v1249
  %1387 = vmatprep.subr.bf16.mxu0 0
  %1388 = vmatpush1.bf16.msra.mxu0 %v1250
  %1389 = vmatprep.subr.bf16.mxu0 0
  %1390 = vmatpush1.bf16.msra.mxu0 %v1251
  %1391 = vmatprep.subr.bf16.mxu0 0
  %1392 = vmatpush1.bf16.msra.mxu0 %v1252
  %1393 = vmatprep.subr.bf16.mxu0 0
  %1394 = vmatpush1.bf16.msra.mxu0 %v1253
  %1395 = vmatprep.subr.bf16.mxu0 0
  %1396 = vmatpush1.bf16.msra.mxu0 %v1254
  %1397 = vmatprep.subr.bf16.mxu0 0
  %1398 = vmatpush1.bf16.msra.mxu0 %v1255
  %1399 = vmatprep.subr.bf16.mxu0 0
  %1400 = vmatpush1.bf16.msra.mxu0 %v1256
  %1401 = vmatprep.mubr.bf16.mxu0 %v835
  %1402 = vmatmul.mubr.bf16.gmra.mrb[0].mxu0 %v834
  %v1403 = vpop.f32.mrb[0].mxu0
  %v1404 = vadd.f32 %v983, %v1403
  %v1405 = vpop.f32.mrb[0].mxu0
  %v1406 = vpop.f32.mrb[0].mxu0
  %v1407 = vadd.f32 %v983, %v1406
  %v1408 = vpop.f32.mrb[0].mxu0
  %1409 = vmatprep.mubr.bf16.mxu0 %v843
  %1410 = vmatmul.mubr.bf16.gmra.mrb[0].mxu0 %v842
  %v1411 = vpop.f32.mrb[0].mxu0
  %v1412 = vadd.f32 %v983, %v1411
  %v1413 = vpop.f32.mrb[0].mxu0
  %v1414 = vpop.f32.mrb[0].mxu0
  %v1415 = vpop.f32.mrb[0].mxu0
  %1416 = vdwg.mxu0
  %1417 = vmatprep.subr.bf16.mxu0 0
  %1418 = vmatpush1.bf16.msra.mxu0 %v1257
  %1419 = vmatprep.subr.bf16.mxu0 0
  %1420 = vmatpush1.bf16.msra.mxu0 %v1258
  %1421 = vmatprep.subr.bf16.mxu0 0
  %1422 = vmatpush1.bf16.msra.mxu0 %v1259
  %1423 = vmatprep.subr.bf16.mxu0 0
  %1424 = vmatpush1.bf16.msra.mxu0 %v1260
  %1425 = vmatprep.subr.bf16.mxu0 0
  %1426 = vmatpush1.bf16.msra.mxu0 %v1261
  %1427 = vmatprep.subr.bf16.mxu0 0
  %1428 = vmatpush1.bf16.msra.mxu0 %v1262
  %1429 = vmatprep.subr.bf16.mxu0 0
  %1430 = vmatpush1.bf16.msra.mxu0 %v1263
  %1431 = vmatprep.subr.bf16.mxu0 0
  %1432 = vmatpush1.bf16.msra.mxu0 %v1264
  %1433 = vmatprep.subr.bf16.mxu0 0
  %1434 = vmatpush1.bf16.msra.mxu0 %v1265
  %1435 = vmatprep.subr.bf16.mxu0 0
  %1436 = vmatpush1.bf16.msra.mxu0 %v1266
  %1437 = vmatprep.subr.bf16.mxu0 0
  %1438 = vmatpush1.bf16.msra.mxu0 %v1267
  %1439 = vmatprep.subr.bf16.mxu0 0
  %1440 = vmatpush1.bf16.msra.mxu0 %v1268
  %1441 = vmatprep.subr.bf16.mxu0 0
  %1442 = vmatpush1.bf16.msra.mxu0 %v1269
  %1443 = vmatprep.subr.bf16.mxu0 0
  %1444 = vmatpush1.bf16.msra.mxu0 %v1270
  %1445 = vmatprep.subr.bf16.mxu0 0
  %1446 = vmatpush1.bf16.msra.mxu0 %v1271
  %1447 = vmatprep.subr.bf16.mxu0 0
  %1448 = vmatpush1.bf16.msra.mxu0 %v1272
  %1449 = vmatprep.mubr.bf16.mxu0 %v837
  %1450 = vmatmul.mubr.bf16.gmra.mrb[0].mxu0 %v836
  %v1451 = vpop.f32.mrb[0].mxu0
  %v1452 = vadd.f32 %v1404, %v1451
  %v1453 = vpop.f32.mrb[0].mxu0
  %v1454 = vpop.f32.mrb[0].mxu0
  %v1455 = vadd.f32 %v1407, %v1454
  %v1456 = vpop.f32.mrb[0].mxu0
  %1457 = vmatprep.mubr.bf16.mxu0 %v845
  %1458 = vmatmul.mubr.bf16.gmra.mrb[0].mxu0 %v844
  %v1459 = vpop.f32.mrb[0].mxu0
  %v1460 = vadd.f32 %v1412, %v1459
  %v1461 = vpop.f32.mrb[0].mxu0
  %v1462 = vpop.f32.mrb[0].mxu0
  %v1463 = vpop.f32.mrb[0].mxu0
  %1464 = vdwg.mxu0
  %1465 = vmatprep.subr.bf16.mxu0 0
  %1466 = vmatpush1.bf16.msra.mxu0 %v1273
  %1467 = vmatprep.subr.bf16.mxu0 0
  %1468 = vmatpush1.bf16.msra.mxu0 %v1274
  %1469 = vmatprep.subr.bf16.mxu0 0
  %1470 = vmatpush1.bf16.msra.mxu0 %v1275
  %1471 = vmatprep.subr.bf16.mxu0 0
  %1472 = vmatpush1.bf16.msra.mxu0 %v1276
  %1473 = vmatprep.subr.bf16.mxu0 0
  %1474 = vmatpush1.bf16.msra.mxu0 %v1277
  %1475 = vmatprep.subr.bf16.mxu0 0
  %1476 = vmatpush1.bf16.msra.mxu0 %v1278
  %1477 = vmatprep.subr.bf16.mxu0 0
  %1478 = vmatpush1.bf16.msra.mxu0 %v1279
  %1479 = vmatprep.subr.bf16.mxu0 0
  %1480 = vmatpush1.bf16.msra.mxu0 %v1280
  %1481 = vmatprep.subr.bf16.mxu0 0
  %1482 = vmatpush1.bf16.msra.mxu0 %v1281
  %1483 = vmatprep.subr.bf16.mxu0 0
  %1484 = vmatpush1.bf16.msra.mxu0 %v1282
  %1485 = vmatprep.subr.bf16.mxu0 0
  %1486 = vmatpush1.bf16.msra.mxu0 %v1283
  %1487 = vmatprep.subr.bf16.mxu0 0
  %1488 = vmatpush1.bf16.msra.mxu0 %v1284
  %1489 = vmatprep.subr.bf16.mxu0 0
  %1490 = vmatpush1.bf16.msra.mxu0 %v1285
  %1491 = vmatprep.subr.bf16.mxu0 0
  %1492 = vmatpush1.bf16.msra.mxu0 %v1286
  %1493 = vmatprep.subr.bf16.mxu0 0
  %1494 = vmatpush1.bf16.msra.mxu0 %v1287
  %1495 = vmatprep.subr.bf16.mxu0 0
  %1496 = vmatpush1.bf16.msra.mxu0 %v1288
  %1497 = vmatprep.mubr.bf16.mxu0 %v839
  %1498 = vmatmul.mubr.bf16.gmra.mrb[0].mxu0 %v838
  %v1499 = vpop.f32.mrb[0].mxu0
  %v1500 = vadd.f32 %v1452, %v1499
  %v1501 = vpop.f32.mrb[0].mxu0
  %v1502 = vpop.f32.mrb[0].mxu0
  %v1503 = vadd.f32 %v1455, %v1502
  %v1504 = vpop.f32.mrb[0].mxu0
  %1505 = vmatprep.mubr.bf16.mxu0 %v847
  %1506 = vmatmul.mubr.bf16.gmra.mrb[0].mxu0 %v846
  %v1507 = vpop.f32.mrb[0].mxu0
  %v1508 = vadd.f32 %v1460, %v1507
  %v1509 = vpop.f32.mrb[0].mxu0
  %v1510 = vpop.f32.mrb[0].mxu0
  %v1511 = vpop.f32.mrb[0].mxu0
  %1512 = vdwg.mxu0
  %1513 = vmatprep.subr.bf16.mxu0 0
  %1514 = vmatpush1.bf16.msra.mxu0 %v1289
  %1515 = vmatprep.subr.bf16.mxu0 0
  %1516 = vmatpush1.bf16.msra.mxu0 %v1290
  %1517 = vmatprep.subr.bf16.mxu0 0
  %1518 = vmatpush1.bf16.msra.mxu0 %v1291
  %1519 = vmatprep.subr.bf16.mxu0 0
  %1520 = vmatpush1.bf16.msra.mxu0 %v1292
  %1521 = vmatprep.subr.bf16.mxu0 0
  %1522 = vmatpush1.bf16.msra.mxu0 %v1293
  %1523 = vmatprep.subr.bf16.mxu0 0
  %1524 = vmatpush1.bf16.msra.mxu0 %v1294
  %1525 = vmatprep.subr.bf16.mxu0 0
  %1526 = vmatpush1.bf16.msra.mxu0 %v1295
  %1527 = vmatprep.subr.bf16.mxu0 0
  %1528 = vmatpush1.bf16.msra.mxu0 %v1296
  %1529 = vmatprep.subr.bf16.mxu0 0
  %1530 = vmatpush1.bf16.msra.mxu0 %v1297
  %1531 = vmatprep.subr.bf16.mxu0 0
  %1532 = vmatpush1.bf16.msra.mxu0 %v1298
  %1533 = vmatprep.subr.bf16.mxu0 0
  %1534 = vmatpush1.bf16.msra.mxu0 %v1299
  %1535 = vmatprep.subr.bf16.mxu0 0
  %1536 = vmatpush1.bf16.msra.mxu0 %v1300
  %1537 = vmatprep.subr.bf16.mxu0 0
  %1538 = vmatpush1.bf16.msra.mxu0 %v1301
  %1539 = vmatprep.subr.bf16.mxu0 0
  %1540 = vmatpush1.bf16.msra.mxu0 %v1302
  %1541 = vmatprep.subr.bf16.mxu0 0
  %1542 = vmatpush1.bf16.msra.mxu0 %v1303
  %1543 = vmatprep.subr.bf16.mxu0 0
  %1544 = vmatpush1.bf16.msra.mxu0 %v1304
  %1545 = vmatprep.mubr.bf16.mxu0 %v841
  %1546 = vmatmul.mubr.bf16.gmra.mrb[0].mxu0 %v840
  %v1547 = vpop.f32.mrb[0].mxu0
  %v1548 = vadd.f32 %v1500, %v1547
  %v1549 = vpop.f32.mrb[0].mxu0
  %v1550 = vpop.f32.mrb[0].mxu0
  %v1551 = vadd.f32 %v1503, %v1550
  %v1552 = vpop.f32.mrb[0].mxu0
  %1553 = vmatprep.mubr.bf16.mxu0 %v849
  %1554 = vmatmul.mubr.bf16.gmra.mrb[0].mxu0 %v848
  %v1555 = vpop.f32.mrb[0].mxu0
  %v1556 = vadd.f32 %v1508, %v1555
  %v1557 = vpop.f32.mrb[0].mxu0
  %v1558 = vpop.f32.mrb[0].mxu0
  %v1559 = vpop.f32.mrb[0].mxu0
  %1560 = vdwg.mxu0
  %v1561 = vmax.f32 %v1548, 0.0
  %v1562 = vmax.f32 %v1551, 0.0
  %v1563 = vmax.f32 %v1556, 0.0
  %v1565 = vrot.slane %v1561, 2
  %v1567 = vrot.slane %v1561, 4
  %v1569 = vrot.slane %v1561, 6
  %v1572 = vrot.slane %v1562, 2
  %v1574 = vrot.slane %v1562, 4
  %v1576 = vrot.slane %v1562, 6
  %v1578 = vpack.c.bf16 %v1561, %v1561
  %v1579 = vpack.c.bf16 %v1565, %v1565
  %v1580 = vpack.c.bf16 %v1567, %v1567
  %v1581 = vpack.c.bf16 %v1569, %v1569
  %v1582 = vpack.c.bf16 %v1562, %v1562
  %v1583 = vpack.c.bf16 %v1572, %v1572
  %v1584 = vpack.c.bf16 %v1574, %v1574
  %v1585 = vpack.c.bf16 %v1576, %v1576
  %v1586 = vpack.c.bf16 %v1563, %v1563
  %v1587 = vld [vmem:[%s6] sm:$0xf]
  %v1588 = vld [vmem:[%s6 + $0x4] sm:$0xf]
  %v1589 = vld [vmem:[%s6 + $0x8] sm:$0xf]
  %v1590 = vld [vmem:[%s6 + $0xc] sm:$0xf]
  %v1591 = vld [vmem:[%s6 + $0x10] sm:$0xf]
  %v1592 = vld [vmem:[%s6 + $0x14] sm:$0xf]
  %v1593 = vld [vmem:[%s6 + $0x18] sm:$0xf]
  %v1594 = vld [vmem:[%s6 + $0x1c] sm:$0xf]
  %v1595 = vld [vmem:[%s6 + $0x20] sm:$0xf]
  %v1596 = vld [vmem:[%s6 + $0x24] sm:$0xf]
  %v1597 = vld [vmem:[%s6 + $0x28] sm:$0xf]
  %v1598 = vld [vmem:[%s6 + $0x2c] sm:$0xf]
  %v1599 = vld [vmem:[%s6 + $0x30] sm:$0xf]
  %v1600 = vld [vmem:[%s6 + $0x34] sm:$0xf]
  %v1601 = vld [vmem:[%s6 + $0x38] sm:$0xf]
  %v1602 = vld [vmem:[%s6 + $0x3c] sm:$0xf]
  %v1603 = vld [vmem:[%s6 + $0x40] sm:$0xf]
  %v1604 = vld [vmem:[%s6 + $0x44] sm:$0xf]
  %v1605 = vld [vmem:[%s6 + $0x48] sm:$0xf]
  %v1606 = vld [vmem:[%s6 + $0x4c] sm:$0xf]
  %v1607 = vld [vmem:[%s6 + $0x50] sm:$0xf]
  %v1608 = vld [vmem:[%s6 + $0x54] sm:$0xf]
  %v1609 = vld [vmem:[%s6 + $0x58] sm:$0xf]
  %v1610 = vld [vmem:[%s6 + $0x5c] sm:$0xf]
  %v1611 = vld [vmem:[%s6 + $0x60] sm:$0xf]
  %v1612 = vld [vmem:[%s6 + $0x64] sm:$0xf]
  %v1613 = vld [vmem:[%s6 + $0x68] sm:$0xf]
  %v1614 = vld [vmem:[%s6 + $0x6c] sm:$0xf]
  %v1615 = vld [vmem:[%s6 + $0x70] sm:$0xf]
  %v1616 = vld [vmem:[%s6 + $0x74] sm:$0xf]
  %v1617 = vld [vmem:[%s6 + $0x78] sm:$0xf]
  %v1618 = vld [vmem:[%s6 + $0x7c] sm:$0xf]
  %v1619 = vld [vmem:[%s6 + $0x80] sm:$0xf]
  %v1620 = vld [vmem:[%s6 + $0x84] sm:$0xf]
  %v1621 = vld [vmem:[%s6 + $0x88] sm:$0xf]
  %v1622 = vld [vmem:[%s6 + $0x8c] sm:$0xf]
  %v1623 = vld [vmem:[%s6 + $0x90] sm:$0xf]
  %v1624 = vld [vmem:[%s6 + $0x94] sm:$0xf]
  %v1625 = vld [vmem:[%s6 + $0x98] sm:$0xf]
  %v1626 = vld [vmem:[%s6 + $0x9c] sm:$0xf]
  %v1627 = vld [vmem:[%s6 + $0xa0] sm:$0xf]
  %v1628 = vld [vmem:[%s6 + $0xa4] sm:$0xf]
  %v1629 = vld [vmem:[%s6 + $0xa8] sm:$0xf]
  %v1630 = vld [vmem:[%s6 + $0xac] sm:$0xf]
  %v1631 = vld [vmem:[%s6 + $0xb0] sm:$0xf]
  %v1632 = vld [vmem:[%s6 + $0xb4] sm:$0xf]
  %v1633 = vld [vmem:[%s6 + $0xb8] sm:$0xf]
  %v1634 = vld [vmem:[%s6 + $0xbc] sm:$0xf]
  %v1635 = vld [vmem:[%s6 + $0xc0] sm:$0xf]
  %v1636 = vld [vmem:[%s6 + $0xc4] sm:$0xf]
  %v1637 = vld [vmem:[%s6 + $0xc8] sm:$0xf]
  %v1638 = vld [vmem:[%s6 + $0xcc] sm:$0xf]
  %v1639 = vld [vmem:[%s6 + $0xd0] sm:$0xf]
  %v1640 = vld [vmem:[%s6 + $0xd4] sm:$0xf]
  %v1641 = vld [vmem:[%s6 + $0xd8] sm:$0xf]
  %v1642 = vld [vmem:[%s6 + $0xdc] sm:$0xf]
  %v1643 = vld [vmem:[%s6 + $0xe0] sm:$0xf]
  %v1644 = vld [vmem:[%s6 + $0xe4] sm:$0xf]
  %v1645 = vld [vmem:[%s6 + $0xe8] sm:$0xf]
  %v1646 = vld [vmem:[%s6 + $0xec] sm:$0xf]
  %v1647 = vld [vmem:[%s6 + $0xf0] sm:$0xf]
  %v1648 = vld [vmem:[%s6 + $0xf4] sm:$0xf]
  %v1649 = vld [vmem:[%s6 + $0xf8] sm:$0xf]
  %v1650 = vld [vmem:[%s6 + $0xfc] sm:$0xf]
  %v1651 = vld [vmem:[%s6 + $0x100] sm:$0xf]
  %v1652 = vld [vmem:[%s6 + $0x104] sm:$0xf]
  %v1653 = vld [vmem:[%s6 + $0x108] sm:$0xf]
  %v1654 = vld [vmem:[%s6 + $0x10c] sm:$0xf]
  %v1655 = vld [vmem:[%s6 + $0x110] sm:$0xf]
  %v1656 = vld [vmem:[%s6 + $0x114] sm:$0xf]
  %v1657 = vld [vmem:[%s6 + $0x118] sm:$0xf]
  %v1658 = vld [vmem:[%s6 + $0x11c] sm:$0xf]
  %v1659 = vld [vmem:[%s6 + $0x120] sm:$0xf]
  %v1660 = vld [vmem:[%s6 + $0x124] sm:$0xf]
  %v1661 = vld [vmem:[%s6 + $0x128] sm:$0xf]
  %v1662 = vld [vmem:[%s6 + $0x12c] sm:$0xf]
  %v1663 = vld [vmem:[%s6 + $0x130] sm:$0xf]
  %v1664 = vld [vmem:[%s6 + $0x134] sm:$0xf]
  %v1665 = vld [vmem:[%s6 + $0x138] sm:$0xf]
  %v1666 = vld [vmem:[%s6 + $0x13c] sm:$0xf]
  %v1667 = vld [vmem:[%s6 + $0x140] sm:$0xf]
  %v1668 = vld [vmem:[%s6 + $0x144] sm:$0xf]
  %v1669 = vld [vmem:[%s6 + $0x148] sm:$0xf]
  %v1670 = vld [vmem:[%s6 + $0x14c] sm:$0xf]
  %v1671 = vld [vmem:[%s6 + $0x150] sm:$0xf]
  %v1672 = vld [vmem:[%s6 + $0x154] sm:$0xf]
  %v1673 = vld [vmem:[%s6 + $0x158] sm:$0xf]
  %v1674 = vld [vmem:[%s6 + $0x15c] sm:$0xf]
  %v1675 = vld [vmem:[%s6 + $0x160] sm:$0xf]
  %v1676 = vld [vmem:[%s6 + $0x164] sm:$0xf]
  %v1677 = vld [vmem:[%s6 + $0x168] sm:$0xf]
  %v1678 = vld [vmem:[%s6 + $0x16c] sm:$0xf]
  %v1679 = vld [vmem:[%s6 + $0x170] sm:$0xf]
  %v1680 = vld [vmem:[%s6 + $0x174] sm:$0xf]
  %v1681 = vld [vmem:[%s6 + $0x178] sm:$0xf]
  %v1682 = vld [vmem:[%s6 + $0x17c] sm:$0xf]
  %v1683 = vld [vmem:[%s6 + $0x180] sm:$0xf]
  %v1684 = vld [vmem:[%s6 + $0x184] sm:$0xf]
  %v1685 = vld [vmem:[%s6 + $0x188] sm:$0xf]
  %v1686 = vld [vmem:[%s6 + $0x18c] sm:$0xf]
  %v1687 = vld [vmem:[%s6 + $0x190] sm:$0xf]
  %v1688 = vld [vmem:[%s6 + $0x194] sm:$0xf]
  %v1689 = vld [vmem:[%s6 + $0x198] sm:$0xf]
  %v1690 = vld [vmem:[%s6 + $0x19c] sm:$0xf]
  %v1691 = vld [vmem:[%s6 + $0x1a0] sm:$0xf]
  %v1692 = vld [vmem:[%s6 + $0x1a4] sm:$0xf]
  %v1693 = vld [vmem:[%s6 + $0x1a8] sm:$0xf]
  %v1694 = vld [vmem:[%s6 + $0x1ac] sm:$0xf]
  %v1695 = vld [vmem:[%s6 + $0x1b0] sm:$0xf]
  %v1696 = vld [vmem:[%s6 + $0x1b4] sm:$0xf]
  %v1697 = vld [vmem:[%s6 + $0x1b8] sm:$0xf]
  %v1698 = vld [vmem:[%s6 + $0x1bc] sm:$0xf]
  %v1699 = vld [vmem:[%s6 + $0x1c0] sm:$0xf]
  %v1700 = vld [vmem:[%s6 + $0x1c4] sm:$0xf]
  %v1701 = vld [vmem:[%s6 + $0x1c8] sm:$0xf]
  %v1702 = vld [vmem:[%s6 + $0x1cc] sm:$0xf]
  %v1703 = vld [vmem:[%s6 + $0x1d0] sm:$0xf]
  %v1704 = vld [vmem:[%s6 + $0x1d4] sm:$0xf]
  %v1705 = vld [vmem:[%s6 + $0x1d8] sm:$0xf]
  %v1706 = vld [vmem:[%s6 + $0x1dc] sm:$0xf]
  %v1707 = vld [vmem:[%s6 + $0x1e0] sm:$0xf]
  %v1708 = vld [vmem:[%s6 + $0x1e4] sm:$0xf]
  %v1709 = vld [vmem:[%s6 + $0x1e8] sm:$0xf]
  %v1710 = vld [vmem:[%s6 + $0x1ec] sm:$0xf]
  %v1711 = vld [vmem:[%s6 + $0x1f0] sm:$0xf]
  %v1712 = vld [vmem:[%s6 + $0x1f4] sm:$0xf]
  %v1713 = vld [vmem:[%s6 + $0x1f8] sm:$0xf]
  %v1714 = vld [vmem:[%s6 + $0x1fc] sm:$0xf]
  %v1715 = vld [vmem:[%s6 + $0x200] sm:$0xf]
  %v1716 = vld [vmem:[%s6 + $0x204] sm:$0xf]
  %v1717 = vld [vmem:[%s6 + $0x208] sm:$0xf]
  %v1718 = vld [vmem:[%s6 + $0x20c] sm:$0xf]
  %v1719 = vld [vmem:[%s6 + $0x210] sm:$0xf]
  %v1720 = vld [vmem:[%s6 + $0x214] sm:$0xf]
  %v1721 = vld [vmem:[%s6 + $0x218] sm:$0xf]
  %v1722 = vld [vmem:[%s6 + $0x21c] sm:$0xf]
  %v1723 = vld [vmem:[%s6 + $0x220] sm:$0xf]
  %v1724 = vld [vmem:[%s6 + $0x224] sm:$0xf]
  %v1725 = vld [vmem:[%s6 + $0x228] sm:$0xf]
  %v1726 = vld [vmem:[%s6 + $0x22c] sm:$0xf]
  %v1727 = vld [vmem:[%s6 + $0x230] sm:$0xf]
  %v1728 = vld [vmem:[%s6 + $0x234] sm:$0xf]
  %v1729 = vld [vmem:[%s6 + $0x238] sm:$0xf]
  %v1730 = vld [vmem:[%s6 + $0x23c] sm:$0xf]
  %v1731 = vld [vmem:[%s7] sm:$0x1]
  %v1733 = vlaneseq
  %v1734 = vshrl.u32 %v1733, 7
  %v1735 = vsub.s32 0, %v1734
  %v1736 = vrot.slane %v1731, %v1735
  %v1882 = vunpack.c.l.b16 %v1587
  %v1883 = vunpack.c.l.b16 %v1588
  %v1884 = vunpack.c.l.b16 %v1589
  %v1885 = vunpack.c.l.b16 %v1590
  %v1886 = vunpack.c.l.b16 %v1591
  %v1887 = vunpack.c.l.b16 %v1592
  %v1888 = vunpack.c.l.b16 %v1593
  %v1889 = vunpack.c.l.b16 %v1594
  %v1890 = vunpack.c.l.b16 %v1595
  %v1891 = vunpack.c.l.b16 %v1596
  %v1892 = vunpack.c.l.b16 %v1597
  %v1893 = vunpack.c.l.b16 %v1598
  %v1894 = vunpack.c.l.b16 %v1599
  %v1895 = vunpack.c.l.b16 %v1600
  %v1896 = vunpack.c.l.b16 %v1601
  %v1897 = vunpack.c.l.b16 %v1602
  %v1898 = vunpack.c.l.b16 %v1603
  %v1899 = vunpack.c.l.b16 %v1604
  %v1900 = vunpack.c.l.b16 %v1605
  %v1901 = vunpack.c.l.b16 %v1606
  %v1902 = vunpack.c.l.b16 %v1607
  %v1903 = vunpack.c.l.b16 %v1608
  %v1904 = vunpack.c.l.b16 %v1609
  %v1905 = vunpack.c.l.b16 %v1610
  %v1906 = vunpack.c.l.b16 %v1611
  %v1907 = vunpack.c.l.b16 %v1612
  %v1908 = vunpack.c.l.b16 %v1613
  %v1909 = vunpack.c.l.b16 %v1614
  %v1910 = vunpack.c.l.b16 %v1615
  %v1911 = vunpack.c.l.b16 %v1616
  %v1912 = vunpack.c.l.b16 %v1617
  %v1913 = vunpack.c.l.b16 %v1618
  %v1914 = vunpack.c.l.b16 %v1619
  %v1915 = vunpack.c.l.b16 %v1620
  %v1916 = vunpack.c.l.b16 %v1621
  %v1917 = vunpack.c.l.b16 %v1622
  %v1918 = vunpack.c.l.b16 %v1623
  %v1919 = vunpack.c.l.b16 %v1624
  %v1920 = vunpack.c.l.b16 %v1625
  %v1921 = vunpack.c.l.b16 %v1626
  %v1922 = vunpack.c.l.b16 %v1627
  %v1923 = vunpack.c.l.b16 %v1628
  %v1924 = vunpack.c.l.b16 %v1629
  %v1925 = vunpack.c.l.b16 %v1630
  %v1926 = vunpack.c.l.b16 %v1631
  %v1927 = vunpack.c.l.b16 %v1632
  %v1928 = vunpack.c.l.b16 %v1633
  %v1929 = vunpack.c.l.b16 %v1634
  %v1930 = vunpack.c.l.b16 %v1635
  %v1931 = vunpack.c.l.b16 %v1636
  %v1932 = vunpack.c.l.b16 %v1637
  %v1933 = vunpack.c.l.b16 %v1638
  %v1934 = vunpack.c.l.b16 %v1639
  %v1935 = vunpack.c.l.b16 %v1640
  %v1936 = vunpack.c.l.b16 %v1641
  %v1937 = vunpack.c.l.b16 %v1642
  %v1938 = vunpack.c.l.b16 %v1643
  %v1939 = vunpack.c.l.b16 %v1644
  %v1940 = vunpack.c.l.b16 %v1645
  %v1941 = vunpack.c.l.b16 %v1646
  %v1942 = vunpack.c.l.b16 %v1647
  %v1943 = vunpack.c.l.b16 %v1648
  %v1944 = vunpack.c.l.b16 %v1649
  %v1945 = vunpack.c.l.b16 %v1650
  %v1946 = vunpack.c.l.b16 %v1651
  %v1947 = vunpack.c.l.b16 %v1652
  %v1948 = vunpack.c.l.b16 %v1653
  %v1949 = vunpack.c.l.b16 %v1654
  %v1950 = vunpack.c.l.b16 %v1655
  %v1951 = vunpack.c.l.b16 %v1656
  %v1952 = vunpack.c.l.b16 %v1657
  %v1953 = vunpack.c.l.b16 %v1658
  %v1954 = vunpack.c.l.b16 %v1659
  %v1955 = vunpack.c.l.b16 %v1660
  %v1956 = vunpack.c.l.b16 %v1661
  %v1957 = vunpack.c.l.b16 %v1662
  %v1958 = vunpack.c.l.b16 %v1663
  %v1959 = vunpack.c.l.b16 %v1664
  %v1960 = vunpack.c.l.b16 %v1665
  %v1961 = vunpack.c.l.b16 %v1666
  %v1962 = vunpack.c.l.b16 %v1667
  %v1963 = vunpack.c.l.b16 %v1668
  %v1964 = vunpack.c.l.b16 %v1669
  %v1965 = vunpack.c.l.b16 %v1670
  %v1966 = vunpack.c.l.b16 %v1671
  %v1967 = vunpack.c.l.b16 %v1672
  %v1968 = vunpack.c.l.b16 %v1673
  %v1969 = vunpack.c.l.b16 %v1674
  %v1970 = vunpack.c.l.b16 %v1675
  %v1971 = vunpack.c.l.b16 %v1676
  %v1972 = vunpack.c.l.b16 %v1677
  %v1973 = vunpack.c.l.b16 %v1678
  %v1974 = vunpack.c.l.b16 %v1679
  %v1975 = vunpack.c.l.b16 %v1680
  %v1976 = vunpack.c.l.b16 %v1681
  %v1977 = vunpack.c.l.b16 %v1682
  %v1978 = vunpack.c.l.b16 %v1683
  %v1979 = vunpack.c.l.b16 %v1684
  %v1980 = vunpack.c.l.b16 %v1685
  %v1981 = vunpack.c.l.b16 %v1686
  %v1982 = vunpack.c.l.b16 %v1687
  %v1983 = vunpack.c.l.b16 %v1688
  %v1984 = vunpack.c.l.b16 %v1689
  %v1985 = vunpack.c.l.b16 %v1690
  %v1986 = vunpack.c.l.b16 %v1691
  %v1987 = vunpack.c.l.b16 %v1692
  %v1988 = vunpack.c.l.b16 %v1693
  %v1989 = vunpack.c.l.b16 %v1694
  %v1990 = vunpack.c.l.b16 %v1695
  %v1991 = vunpack.c.l.b16 %v1696
  %v1992 = vunpack.c.l.b16 %v1697
  %v1993 = vunpack.c.l.b16 %v1698
  %v1994 = vunpack.c.l.b16 %v1699
  %v1995 = vunpack.c.l.b16 %v1700
  %v1996 = vunpack.c.l.b16 %v1701
  %v1997 = vunpack.c.l.b16 %v1702
  %v1998 = vunpack.c.l.b16 %v1703
  %v1999 = vunpack.c.l.b16 %v1704
  %v2000 = vunpack.c.l.b16 %v1705
  %v2001 = vunpack.c.l.b16 %v1706
  %v2002 = vunpack.c.l.b16 %v1707
  %v2003 = vunpack.c.l.b16 %v1708
  %v2004 = vunpack.c.l.b16 %v1709
  %v2005 = vunpack.c.l.b16 %v1710
  %v2006 = vunpack.c.l.b16 %v1711
  %v2007 = vunpack.c.l.b16 %v1712
  %v2008 = vunpack.c.l.b16 %v1713
  %v2009 = vunpack.c.l.b16 %v1714
  %v2010 = vunpack.c.l.b16 %v1715
  %v2011 = vunpack.c.l.b16 %v1716
  %v2012 = vunpack.c.l.b16 %v1717
  %v2013 = vunpack.c.l.b16 %v1718
  %v2014 = vunpack.c.l.b16 %v1719
  %v2015 = vunpack.c.l.b16 %v1720
  %v2016 = vunpack.c.l.b16 %v1721
  %v2017 = vunpack.c.l.b16 %v1722
  %v2018 = vunpack.c.l.b16 %v1723
  %v2019 = vunpack.c.l.b16 %v1724
  %v2020 = vunpack.c.l.b16 %v1725
  %v2021 = vunpack.c.l.b16 %v1726
  %v2022 = vunpack.c.l.b16 %v1727
  %v2023 = vunpack.c.l.b16 %v1728
  %v2024 = vunpack.c.l.b16 %v1729
  %v2025 = vunpack.c.l.b16 %v1730
  %v2026 = vpack.c.b16 %v1883, %v1882
  %v2027 = vpack.c.b16 %v1885, %v1884
  %v2028 = vpack.c.b16 %v1887, %v1886
  %v2029 = vpack.c.b16 %v1889, %v1888
  %v2030 = vpack.c.b16 %v1891, %v1890
  %v2031 = vpack.c.b16 %v1893, %v1892
  %v2032 = vpack.c.b16 %v1895, %v1894
  %v2033 = vpack.c.b16 %v1897, %v1896
  %v2034 = vpack.c.b16 %v1899, %v1898
  %v2035 = vpack.c.b16 %v1901, %v1900
  %v2036 = vpack.c.b16 %v1903, %v1902
  %v2037 = vpack.c.b16 %v1905, %v1904
  %v2038 = vpack.c.b16 %v1907, %v1906
  %v2039 = vpack.c.b16 %v1909, %v1908
  %v2040 = vpack.c.b16 %v1911, %v1910
  %v2041 = vpack.c.b16 %v1913, %v1912
  %v2042 = vpack.c.b16 %v1915, %v1914
  %v2043 = vpack.c.b16 %v1917, %v1916
  %v2044 = vpack.c.b16 %v1919, %v1918
  %v2045 = vpack.c.b16 %v1921, %v1920
  %v2046 = vpack.c.b16 %v1923, %v1922
  %v2047 = vpack.c.b16 %v1925, %v1924
  %v2048 = vpack.c.b16 %v1927, %v1926
  %v2049 = vpack.c.b16 %v1929, %v1928
  %v2050 = vpack.c.b16 %v1931, %v1930
  %v2051 = vpack.c.b16 %v1933, %v1932
  %v2052 = vpack.c.b16 %v1935, %v1934
  %v2053 = vpack.c.b16 %v1937, %v1936
  %v2054 = vpack.c.b16 %v1939, %v1938
  %v2055 = vpack.c.b16 %v1941, %v1940
  %v2056 = vpack.c.b16 %v1943, %v1942
  %v2057 = vpack.c.b16 %v1945, %v1944
  %v2058 = vpack.c.b16 %v1947, %v1946
  %v2059 = vpack.c.b16 %v1949, %v1948
  %v2060 = vpack.c.b16 %v1951, %v1950
  %v2061 = vpack.c.b16 %v1953, %v1952
  %v2062 = vpack.c.b16 %v1955, %v1954
  %v2063 = vpack.c.b16 %v1957, %v1956
  %v2064 = vpack.c.b16 %v1959, %v1958
  %v2065 = vpack.c.b16 %v1961, %v1960
  %v2066 = vpack.c.b16 %v1963, %v1962
  %v2067 = vpack.c.b16 %v1965, %v1964
  %v2068 = vpack.c.b16 %v1967, %v1966
  %v2069 = vpack.c.b16 %v1969, %v1968
  %v2070 = vpack.c.b16 %v1971, %v1970
  %v2071 = vpack.c.b16 %v1973, %v1972
  %v2072 = vpack.c.b16 %v1975, %v1974
  %v2073 = vpack.c.b16 %v1977, %v1976
  %v2074 = vpack.c.b16 %v1979, %v1978
  %v2075 = vpack.c.b16 %v1981, %v1980
  %v2076 = vpack.c.b16 %v1983, %v1982
  %v2077 = vpack.c.b16 %v1985, %v1984
  %v2078 = vpack.c.b16 %v1987, %v1986
  %v2079 = vpack.c.b16 %v1989, %v1988
  %v2080 = vpack.c.b16 %v1991, %v1990
  %v2081 = vpack.c.b16 %v1993, %v1992
  %v2082 = vpack.c.b16 %v1995, %v1994
  %v2083 = vpack.c.b16 %v1997, %v1996
  %v2084 = vpack.c.b16 %v1999, %v1998
  %v2085 = vpack.c.b16 %v2001, %v2000
  %v2086 = vpack.c.b16 %v2003, %v2002
  %v2087 = vpack.c.b16 %v2005, %v2004
  %v2088 = vpack.c.b16 %v2007, %v2006
  %v2089 = vpack.c.b16 %v2009, %v2008
  %v2090 = vpack.c.b16 %v2011, %v2010
  %v2091 = vpack.c.b16 %v2013, %v2012
  %v2092 = vpack.c.b16 %v2015, %v2014
  %v2093 = vpack.c.b16 %v2017, %v2016
  %v2094 = vpack.c.b16 %v2019, %v2018
  %v2095 = vpack.c.b16 %v2021, %v2020
  %v2096 = vpack.c.b16 %v2023, %v2022
  %v2097 = vpack.c.b16 %v2025, %v2024
  %2170 = vmatprep.subr.bf16.mxu0 0
  %2171 = vmatpush1.bf16.msra.mxu0 %v2026
  %2172 = vmatprep.subr.bf16.mxu0 0
  %2173 = vmatpush1.bf16.msra.mxu0 %v2027
  %2174 = vmatprep.subr.bf16.mxu0 0
  %2175 = vmatpush1.bf16.msra.mxu0 %v2028
  %2176 = vmatprep.subr.bf16.mxu0 0
  %2177 = vmatpush1.bf16.msra.mxu0 %v2029
  %2178 = vmatprep.subr.bf16.mxu0 0
  %2179 = vmatpush1.bf16.msra.mxu0 %v2030
  %2180 = vmatprep.subr.bf16.mxu0 0
  %2181 = vmatpush1.bf16.msra.mxu0 %v2031
  %2182 = vmatprep.subr.bf16.mxu0 0
  %2183 = vmatpush1.bf16.msra.mxu0 %v2032
  %2184 = vmatprep.subr.bf16.mxu0 0
  %2185 = vmatpush1.bf16.msra.mxu0 %v2033
  %2186 = vmatprep.subr.bf16.mxu0 0
  %2187 = vmatpush1.bf16.msra.mxu0 %v2034
  %2188 = vmatprep.subr.bf16.mxu0 0
  %2189 = vmatpush1.bf16.msra.mxu0 %v2035
  %2190 = vmatprep.subr.bf16.mxu0 0
  %2191 = vmatpush1.bf16.msra.mxu0 %v2036
  %2192 = vmatprep.subr.bf16.mxu0 0
  %2193 = vmatpush1.bf16.msra.mxu0 %v2037
  %2194 = vmatprep.subr.bf16.mxu0 0
  %2195 = vmatpush1.bf16.msra.mxu0 %v2038
  %2196 = vmatprep.subr.bf16.mxu0 0
  %2197 = vmatpush1.bf16.msra.mxu0 %v2039
  %2198 = vmatprep.subr.bf16.mxu0 0
  %2199 = vmatpush1.bf16.msra.mxu0 %v2040
  %2200 = vmatprep.subr.bf16.mxu0 0
  %2201 = vmatpush1.bf16.msra.mxu0 %v2041
  %2202 = vmatprep.mubr.bf16.mxu0 %v1579
  %2203 = vmatmul.mubr.bf16.gmra.mrb[0].mxu0 %v1578
  %v2204 = vpop.f32.mrb[0].mxu0
  %v2205 = vadd.f32 %v1736, %v2204
  %v2206 = vpop.f32.mrb[0].mxu0
  %v2207 = vpop.f32.mrb[0].mxu0
  %v2208 = vpop.f32.mrb[0].mxu0
  %2209 = vdwg.mxu0
  %2210 = vmatprep.subr.bf16.mxu0 0
  %2211 = vmatpush1.bf16.msra.mxu0 %v2042
  %2212 = vmatprep.subr.bf16.mxu0 0
  %2213 = vmatpush1.bf16.msra.mxu0 %v2043
  %2214 = vmatprep.subr.bf16.mxu0 0
  %2215 = vmatpush1.bf16.msra.mxu0 %v2044
  %2216 = vmatprep.subr.bf16.mxu0 0
  %2217 = vmatpush1.bf16.msra.mxu0 %v2045
  %2218 = vmatprep.subr.bf16.mxu0 0
  %2219 = vmatpush1.bf16.msra.mxu0 %v2046
  %2220 = vmatprep.subr.bf16.mxu0 0
  %2221 = vmatpush1.bf16.msra.mxu0 %v2047
  %2222 = vmatprep.subr.bf16.mxu0 0
  %2223 = vmatpush1.bf16.msra.mxu0 %v2048
  %2224 = vmatprep.subr.bf16.mxu0 0
  %2225 = vmatpush1.bf16.msra.mxu0 %v2049
  %2226 = vmatprep.subr.bf16.mxu0 0
  %2227 = vmatpush1.bf16.msra.mxu0 %v2050
  %2228 = vmatprep.subr.bf16.mxu0 0
  %2229 = vmatpush1.bf16.msra.mxu0 %v2051
  %2230 = vmatprep.subr.bf16.mxu0 0
  %2231 = vmatpush1.bf16.msra.mxu0 %v2052
  %2232 = vmatprep.subr.bf16.mxu0 0
  %2233 = vmatpush1.bf16.msra.mxu0 %v2053
  %2234 = vmatprep.subr.bf16.mxu0 0
  %2235 = vmatpush1.bf16.msra.mxu0 %v2054
  %2236 = vmatprep.subr.bf16.mxu0 0
  %2237 = vmatpush1.bf16.msra.mxu0 %v2055
  %2238 = vmatprep.subr.bf16.mxu0 0
  %2239 = vmatpush1.bf16.msra.mxu0 %v2056
  %2240 = vmatprep.subr.bf16.mxu0 0
  %2241 = vmatpush1.bf16.msra.mxu0 %v2057
  %2242 = vmatprep.mubr.bf16.mxu0 %v1581
  %2243 = vmatmul.mubr.bf16.gmra.mrb[0].mxu0 %v1580
  %v2244 = vpop.f32.mrb[0].mxu0
  %v2245 = vadd.f32 %v2205, %v2244
  %v2246 = vpop.f32.mrb[0].mxu0
  %v2247 = vpop.f32.mrb[0].mxu0
  %v2248 = vpop.f32.mrb[0].mxu0
  %2249 = vdwg.mxu0
  %2250 = vmatprep.subr.bf16.mxu0 0
  %2251 = vmatpush1.bf16.msra.mxu0 %v2058
  %2252 = vmatprep.subr.bf16.mxu0 0
  %2253 = vmatpush1.bf16.msra.mxu0 %v2059
  %2254 = vmatprep.subr.bf16.mxu0 0
  %2255 = vmatpush1.bf16.msra.mxu0 %v2060
  %2256 = vmatprep.subr.bf16.mxu0 0
  %2257 = vmatpush1.bf16.msra.mxu0 %v2061
  %2258 = vmatprep.subr.bf16.mxu0 0
  %2259 = vmatpush1.bf16.msra.mxu0 %v2062
  %2260 = vmatprep.subr.bf16.mxu0 0
  %2261 = vmatpush1.bf16.msra.mxu0 %v2063
  %2262 = vmatprep.subr.bf16.mxu0 0
  %2263 = vmatpush1.bf16.msra.mxu0 %v2064
  %2264 = vmatprep.subr.bf16.mxu0 0
  %2265 = vmatpush1.bf16.msra.mxu0 %v2065
  %2266 = vmatprep.subr.bf16.mxu0 0
  %2267 = vmatpush1.bf16.msra.mxu0 %v2066
  %2268 = vmatprep.subr.bf16.mxu0 0
  %2269 = vmatpush1.bf16.msra.mxu0 %v2067
  %2270 = vmatprep.subr.bf16.mxu0 0
  %2271 = vmatpush1.bf16.msra.mxu0 %v2068
  %2272 = vmatprep.subr.bf16.mxu0 0
  %2273 = vmatpush1.bf16.msra.mxu0 %v2069
  %2274 = vmatprep.subr.bf16.mxu0 0
  %2275 = vmatpush1.bf16.msra.mxu0 %v2070
  %2276 = vmatprep.subr.bf16.mxu0 0
  %2277 = vmatpush1.bf16.msra.mxu0 %v2071
  %2278 = vmatprep.subr.bf16.mxu0 0
  %2279 = vmatpush1.bf16.msra.mxu0 %v2072
  %2280 = vmatprep.subr.bf16.mxu0 0
  %2281 = vmatpush1.bf16.msra.mxu0 %v2073
  %2282 = vmatprep.mubr.bf16.mxu0 %v1583
  %2283 = vmatmul.mubr.bf16.gmra.mrb[0].mxu0 %v1582
  %v2284 = vpop.f32.mrb[0].mxu0
  %v2285 = vadd.f32 %v2245, %v2284
  %v2286 = vpop.f32.mrb[0].mxu0
  %v2287 = vpop.f32.mrb[0].mxu0
  %v2288 = vpop.f32.mrb[0].mxu0
  %2289 = vdwg.mxu0
  %2290 = vmatprep.subr.bf16.mxu0 0
  %2291 = vmatpush1.bf16.msra.mxu0 %v2074
  %2292 = vmatprep.subr.bf16.mxu0 0
  %2293 = vmatpush1.bf16.msra.mxu0 %v2075
  %2294 = vmatprep.subr.bf16.mxu0 0
  %2295 = vmatpush1.bf16.msra.mxu0 %v2076
  %2296 = vmatprep.subr.bf16.mxu0 0
  %2297 = vmatpush1.bf16.msra.mxu0 %v2077
  %2298 = vmatprep.subr.bf16.mxu0 0
  %2299 = vmatpush1.bf16.msra.mxu0 %v2078
  %2300 = vmatprep.subr.bf16.mxu0 0
  %2301 = vmatpush1.bf16.msra.mxu0 %v2079
  %2302 = vmatprep.subr.bf16.mxu0 0
  %2303 = vmatpush1.bf16.msra.mxu0 %v2080
  %2304 = vmatprep.subr.bf16.mxu0 0
  %2305 = vmatpush1.bf16.msra.mxu0 %v2081
  %2306 = vmatprep.subr.bf16.mxu0 0
  %2307 = vmatpush1.bf16.msra.mxu0 %v2082
  %2308 = vmatprep.subr.bf16.mxu0 0
  %2309 = vmatpush1.bf16.msra.mxu0 %v2083
  %2310 = vmatprep.subr.bf16.mxu0 0
  %2311 = vmatpush1.bf16.msra.mxu0 %v2084
  %2312 = vmatprep.subr.bf16.mxu0 0
  %2313 = vmatpush1.bf16.msra.mxu0 %v2085
  %2314 = vmatprep.subr.bf16.mxu0 0
  %2315 = vmatpush1.bf16.msra.mxu0 %v2086
  %2316 = vmatprep.subr.bf16.mxu0 0
  %2317 = vmatpush1.bf16.msra.mxu0 %v2087
  %2318 = vmatprep.subr.bf16.mxu0 0
  %2319 = vmatpush1.bf16.msra.mxu0 %v2088
  %2320 = vmatprep.subr.bf16.mxu0 0
  %2321 = vmatpush1.bf16.msra.mxu0 %v2089
  %2322 = vmatprep.mubr.bf16.mxu0 %v1585
  %2323 = vmatmul.mubr.bf16.gmra.mrb[0].mxu0 %v1584
  %v2324 = vpop.f32.mrb[0].mxu0
  %v2325 = vadd.f32 %v2285, %v2324
  %v2326 = vpop.f32.mrb[0].mxu0
  %v2327 = vpop.f32.mrb[0].mxu0
  %v2328 = vpop.f32.mrb[0].mxu0
  %2329 = vdwg.mxu0
  %2330 = vmatprep.subr.bf16.mxu0 0
  %2331 = vmatpush1.bf16.msra.mxu0 %v2090
  %2332 = vmatprep.subr.bf16.mxu0 0
  %2333 = vmatpush1.bf16.msra.mxu0 %v2091
  %2334 = vmatprep.subr.bf16.mxu0 0
  %2335 = vmatpush1.bf16.msra.mxu0 %v2092
  %2336 = vmatprep.subr.bf16.mxu0 0
  %2337 = vmatpush1.bf16.msra.mxu0 %v2093
  %2338 = vmatprep.subr.bf16.mxu0 0
  %2339 = vmatpush1.bf16.msra.mxu0 %v2094
  %2340 = vmatprep.subr.bf16.mxu0 0
  %2341 = vmatpush1.bf16.msra.mxu0 %v2095
  %2342 = vmatprep.subr.bf16.mxu0 0
  %2343 = vmatpush1.bf16.msra.mxu0 %v2096
  %2344 = vmatprep.subr.bf16.mxu0 0
  %2345 = vmatpush1.bf16.msra.mxu0 %v2097
  %2346 = vmatprep.subr.bf16.mxu0 0
  %2347 = vmatpush1.bf16.msra.mxu0 0
  %2348 = vmatprep.subr.bf16.mxu0 0
  %2349 = vmatpush1.bf16.msra.mxu0 0
  %2350 = vmatprep.subr.bf16.mxu0 0
  %2351 = vmatpush1.bf16.msra.mxu0 0
  %2352 = vmatprep.subr.bf16.mxu0 0
  %2353 = vmatpush1.bf16.msra.mxu0 0
  %2354 = vmatprep.subr.bf16.mxu0 0
  %2355 = vmatpush1.bf16.msra.mxu0 0
  %2356 = vmatprep.subr.bf16.mxu0 0
  %2357 = vmatpush1.bf16.msra.mxu0 0
  %2358 = vmatprep.subr.bf16.mxu0 0
  %2359 = vmatpush1.bf16.msra.mxu0 0
  %2360 = vmatprep.subr.bf16.mxu0 0
  %2361 = vmatpush1.bf16.msra.mxu0 0
  %2362 = vmatprep.mubr.bf16.mxu0 0
  %2363 = vmatmul.mubr.bf16.gmra.mrb[0].mxu0 %v1586
  %v2364 = vpop.f32.mrb[0].mxu0
  %v2365 = vadd.f32 %v2325, %v2364
  %v2366 = vpop.f32.mrb[0].mxu0
  %v2367 = vpop.f32.mrb[0].mxu0
  %v2368 = vpop.f32.mrb[0].mxu0
  %2369 = vdwg.mxu0
  %v2370 = vmax.f32 %v2365, 0.0
  %v2371 = vpack.c.bf16 %v2370, %v2370
  %v2372 = vld [vmem:[%s8] sm:$0xf]
  %v2373 = vld [vmem:[%s8 + $0x4] sm:$0xf]
  %v2374 = vld [vmem:[%s8 + $0x8] sm:$0xf]
  %v2375 = vld [vmem:[%s8 + $0xc] sm:$0xf]
  %v2376 = vld [vmem:[%s8 + $0x10] sm:$0xf]
  %v2377 = vld [vmem:[%s8 + $0x14] sm:$0xf]
  %v2378 = vld [vmem:[%s8 + $0x18] sm:$0xf]
  %v2379 = vld [vmem:[%s8 + $0x1c] sm:$0xf]
  %v2380 = vld [vmem:[%s8 + $0x20] sm:$0xf]
  %v2381 = vld [vmem:[%s8 + $0x24] sm:$0xf]
  %v2382 = vld [vmem:[%s8 + $0x28] sm:$0xf]
  %v2383 = vld [vmem:[%s8 + $0x2c] sm:$0xf]
  %v2384 = vld [vmem:[%s8 + $0x30] sm:$0xf]
  %v2385 = vld [vmem:[%s8 + $0x34] sm:$0xf]
  %v2386 = vld [vmem:[%s8 + $0x38] sm:$0xf]
  %v2387 = vld [vmem:[%s8 + $0x3c] sm:$0xf]
  %v2388 = vld [vmem:[%s9] sm:$0x1]
  %v2390 = vlaneseq
  %v2391 = vshrl.u32 %v2390, 7
  %v2392 = vsub.s32 0, %v2391
  %v2393 = vrot.slane %v2388, %v2392
  %v2411 = vunpack.c.l.b16 %v2372
  %v2412 = vunpack.c.l.b16 %v2373
  %v2413 = vunpack.c.l.b16 %v2374
  %v2414 = vunpack.c.l.b16 %v2375
  %v2415 = vunpack.c.l.b16 %v2376
  %v2416 = vunpack.c.l.b16 %v2377
  %v2417 = vunpack.c.l.b16 %v2378
  %v2418 = vunpack.c.l.b16 %v2379
  %v2419 = vunpack.c.l.b16 %v2380
  %v2420 = vunpack.c.l.b16 %v2381
  %v2421 = vunpack.c.l.b16 %v2382
  %v2422 = vunpack.c.l.b16 %v2383
  %v2423 = vunpack.c.l.b16 %v2384
  %v2424 = vunpack.c.l.b16 %v2385
  %v2425 = vunpack.c.l.b16 %v2386
  %v2426 = vunpack.c.l.b16 %v2387
  %v2427 = vpack.c.b16 %v2412, %v2411
  %v2428 = vpack.c.b16 %v2414, %v2413
  %v2429 = vpack.c.b16 %v2416, %v2415
  %v2430 = vpack.c.b16 %v2418, %v2417
  %v2431 = vpack.c.b16 %v2420, %v2419
  %v2432 = vpack.c.b16 %v2422, %v2421
  %v2433 = vpack.c.b16 %v2424, %v2423
  %v2434 = vpack.c.b16 %v2426, %v2425
  %2443 = vmatprep.subr.bf16.mxu0 0
  %2444 = vmatpush1.bf16.msra.mxu0 %v2427
  %2445 = vmatprep.subr.bf16.mxu0 0
  %2446 = vmatpush1.bf16.msra.mxu0 %v2428
  %2447 = vmatprep.subr.bf16.mxu0 0
  %2448 = vmatpush1.bf16.msra.mxu0 %v2429
  %2449 = vmatprep.subr.bf16.mxu0 0
  %2450 = vmatpush1.bf16.msra.mxu0 %v2430
  %2451 = vmatprep.subr.bf16.mxu0 0
  %2452 = vmatpush1.bf16.msra.mxu0 %v2431
  %2453 = vmatprep.subr.bf16.mxu0 0
  %2454 = vmatpush1.bf16.msra.mxu0 %v2432
  %2455 = vmatprep.subr.bf16.mxu0 0
  %2456 = vmatpush1.bf16.msra.mxu0 %v2433
  %2457 = vmatprep.subr.bf16.mxu0 0
  %2458 = vmatpush1.bf16.msra.mxu0 %v2434
  %2459 = vmatprep.subr.bf16.mxu0 0
  %2460 = vmatpush1.bf16.msra.mxu0 0
  %2461 = vmatprep.subr.bf16.mxu0 0
  %2462 = vmatpush1.bf16.msra.mxu0 0
  %2463 = vmatprep.subr.bf16.mxu0 0
  %2464 = vmatpush1.bf16.msra.mxu0 0
  %2465 = vmatprep.subr.bf16.mxu0 0
  %2466 = vmatpush1.bf16.msra.mxu0 0
  %2467 = vmatprep.subr.bf16.mxu0 0
  %2468 = vmatpush1.bf16.msra.mxu0 0
  %2469 = vmatprep.subr.bf16.mxu0 0
  %2470 = vmatpush1.bf16.msra.mxu0 0
  %2471 = vmatprep.subr.bf16.mxu0 0
  %2472 = vmatpush1.bf16.msra.mxu0 0
  %2473 = vmatprep.subr.bf16.mxu0 0
  %2474 = vmatpush1.bf16.msra.mxu0 0
  %2475 = vmatprep.mubr.bf16.mxu0 0
  %2476 = vmatmul.mubr.bf16.gmra.mrb[0].mxu0 %v2371
  %v2477 = vpop.f32.mrb[0].mxu0
  %v2478 = vadd.f32 %v2393, %v2477
  %v2479 = vpop.f32.mrb[0].mxu0
  %v2480 = vpop.f32.mrb[0].mxu0
  %v2481 = vpop.f32.mrb[0].mxu0
  %2482 = vdwg.mxu0
  %v2483 = vmax.f32 %v2478, 0.0
  %v2484 = vld [vmem:[%s1] sm:$0x1]
  %v2485 = vld [vmem:[%s10] sm:$0xf]
  %v2486 = vld [vmem:[%s11] sm:$0x1]
  %v2488 = vlaneseq
  %v2489 = vshrl.u32 %v2488, 7
  %v2490 = vsub.s32 0, %v2489
  %v2491 = vrot.slane %v2486, %v2490
  %vm2493 = vcmask 64512
  %v2495 = vsel %vm2493, %v2484, 0
  %v2498 = vsel %vm655, %v2485, 0
  %2500 = vmatprep.subr.bf16.mxu0 0
  %2501 = vmatpush1.bf16.msra.mxu0 %v2498
  %2502 = vmatprep.subr.bf16.mxu0 0
  %2503 = vmatpush1.bf16.msra.mxu0 0
  %2504 = vmatprep.subr.bf16.mxu0 0
  %2505 = vmatpush1.bf16.msra.mxu0 0
  %2506 = vmatprep.subr.bf16.mxu0 0
  %2507 = vmatpush1.bf16.msra.mxu0 0
  %2508 = vmatprep.subr.bf16.mxu0 0
  %2509 = vmatpush1.bf16.msra.mxu0 0
  %2510 = vmatprep.subr.bf16.mxu0 0
  %2511 = vmatpush1.bf16.msra.mxu0 0
  %2512 = vmatprep.subr.bf16.mxu0 0
  %2513 = vmatpush1.bf16.msra.mxu0 0
  %2514 = vmatprep.subr.bf16.mxu0 0
  %2515 = vmatpush1.bf16.msra.mxu0 0
  %2516 = vmatprep.subr.bf16.mxu0 0
  %2517 = vmatpush1.bf16.msra.mxu0 0
  %2518 = vmatprep.subr.bf16.mxu0 0
  %2519 = vmatpush1.bf16.msra.mxu0 0
  %2520 = vmatprep.subr.bf16.mxu0 0
  %2521 = vmatpush1.bf16.msra.mxu0 0
  %2522 = vmatprep.subr.bf16.mxu0 0
  %2523 = vmatpush1.bf16.msra.mxu0 0
  %2524 = vmatprep.subr.bf16.mxu0 0
  %2525 = vmatpush1.bf16.msra.mxu0 0
  %2526 = vmatprep.subr.bf16.mxu0 0
  %2527 = vmatpush1.bf16.msra.mxu0 0
  %2528 = vmatprep.subr.bf16.mxu0 0
  %2529 = vmatpush1.bf16.msra.mxu0 0
  %2530 = vmatprep.subr.bf16.mxu0 0
  %2531 = vmatpush1.bf16.msra.mxu0 0
  %2532 = vmatprep.mubr.bf16.mxu0 0
  %2533 = vmatmul.mubr.bf16.gmra.mrb[0].mxu0 %v2495
  %v2534 = vpop.f32.mrb[0].mxu0
  %v2535 = vadd.f32 %v2491, %v2534
  %v2536 = vpop.f32.mrb[0].mxu0
  %v2537 = vpop.f32.mrb[0].mxu0
  %v2538 = vpop.f32.mrb[0].mxu0
  %2539 = vdwg.mxu0
  %v2540 = vmax.f32 %v2535, 0.0
  %v2541 = vpack.c.bf16 %v2540, %v2540
  %v2542 = vld [vmem:[%s12] sm:$0xf]
  %v2543 = vld [vmem:[%s12 + $0x4] sm:$0xf]
  %v2544 = vld [vmem:[%s12 + $0x8] sm:$0xf]
  %v2545 = vld [vmem:[%s12 + $0xc] sm:$0xf]
  %v2546 = vld [vmem:[%s12 + $0x10] sm:$0xf]
  %v2547 = vld [vmem:[%s12 + $0x14] sm:$0xf]
  %v2548 = vld [vmem:[%s12 + $0x18] sm:$0xf]
  %v2549 = vld [vmem:[%s12 + $0x1c] sm:$0xf]
  %v2550 = vld [vmem:[%s12 + $0x20] sm:$0xf]
  %v2551 = vld [vmem:[%s12 + $0x24] sm:$0xf]
  %v2552 = vld [vmem:[%s13] sm:$0x1]
  %v2554 = vlaneseq
  %v2555 = vshrl.u32 %v2554, 7
  %v2556 = vsub.s32 0, %v2555
  %v2557 = vrot.slane %v2552, %v2556
  %v2569 = vunpack.c.l.b16 %v2542
  %v2570 = vunpack.c.l.b16 %v2543
  %v2571 = vunpack.c.l.b16 %v2544
  %v2572 = vunpack.c.l.b16 %v2545
  %v2573 = vunpack.c.l.b16 %v2546
  %v2574 = vunpack.c.l.b16 %v2547
  %v2575 = vunpack.c.l.b16 %v2548
  %v2576 = vunpack.c.l.b16 %v2549
  %v2577 = vunpack.c.l.b16 %v2550
  %v2578 = vunpack.c.l.b16 %v2551
  %v2579 = vpack.c.b16 %v2570, %v2569
  %v2580 = vpack.c.b16 %v2572, %v2571
  %v2581 = vpack.c.b16 %v2574, %v2573
  %v2582 = vpack.c.b16 %v2576, %v2575
  %v2583 = vpack.c.b16 %v2578, %v2577
  %vm2589 = vcmask 654336
  %v2591 = vsel %vm2589, %v2541, 0
  %2593 = vmatprep.subr.bf16.mxu0 0
  %2594 = vmatpush1.bf16.msra.mxu0 %v2579
  %2595 = vmatprep.subr.bf16.mxu0 0
  %2596 = vmatpush1.bf16.msra.mxu0 %v2580
  %2597 = vmatprep.subr.bf16.mxu0 0
  %2598 = vmatpush1.bf16.msra.mxu0 %v2581
  %2599 = vmatprep.subr.bf16.mxu0 0
  %2600 = vmatpush1.bf16.msra.mxu0 %v2582
  %2601 = vmatprep.subr.bf16.mxu0 0
  %2602 = vmatpush1.bf16.msra.mxu0 %v2583
  %2603 = vmatprep.subr.bf16.mxu0 0
  %2604 = vmatpush1.bf16.msra.mxu0 0
  %2605 = vmatprep.subr.bf16.mxu0 0
  %2606 = vmatpush1.bf16.msra.mxu0 0
  %2607 = vmatprep.subr.bf16.mxu0 0
  %2608 = vmatpush1.bf16.msra.mxu0 0
  %2609 = vmatprep.subr.bf16.mxu0 0
  %2610 = vmatpush1.bf16.msra.mxu0 0
  %2611 = vmatprep.subr.bf16.mxu0 0
  %2612 = vmatpush1.bf16.msra.mxu0 0
  %2613 = vmatprep.subr.bf16.mxu0 0
  %2614 = vmatpush1.bf16.msra.mxu0 0
  %2615 = vmatprep.subr.bf16.mxu0 0
  %2616 = vmatpush1.bf16.msra.mxu0 0
  %2617 = vmatprep.subr.bf16.mxu0 0
  %2618 = vmatpush1.bf16.msra.mxu0 0
  %2619 = vmatprep.subr.bf16.mxu0 0
  %2620 = vmatpush1.bf16.msra.mxu0 0
  %2621 = vmatprep.subr.bf16.mxu0 0
  %2622 = vmatpush1.bf16.msra.mxu0 0
  %2623 = vmatprep.subr.bf16.mxu0 0
  %2624 = vmatpush1.bf16.msra.mxu0 0
  %2625 = vmatprep.mubr.bf16.mxu0 0
  %2626 = vmatmul.mubr.bf16.gmra.mrb[0].mxu0 %v2591
  %v2627 = vpop.f32.mrb[0].mxu0
  %v2628 = vadd.f32 %v2557, %v2627
  %v2629 = vpop.f32.mrb[0].mxu0
  %v2630 = vpop.f32.mrb[0].mxu0
  %v2631 = vpop.f32.mrb[0].mxu0
  %2632 = vdwg.mxu0
  %v2633 = vmax.f32 %v2628, 0.0
  %v2634 = vpack.c.bf16 %v2633, %v2633
  %v2635 = vld [vmem:[%s14] sm:$0xf]
  %v2636 = vld [vmem:[%s14 + $0x4] sm:$0xf]
  %v2637 = vld [vmem:[%s14 + $0x8] sm:$0xf]
  %v2638 = vld [vmem:[%s14 + $0xc] sm:$0xf]
  %v2639 = vld [vmem:[%s14 + $0x10] sm:$0xf]
  %v2640 = vld [vmem:[%s14 + $0x14] sm:$0xf]
  %v2641 = vld [vmem:[%s14 + $0x18] sm:$0xf]
  %v2642 = vld [vmem:[%s14 + $0x1c] sm:$0xf]
  %v2643 = vld [vmem:[%s14 + $0x20] sm:$0xf]
  %v2644 = vld [vmem:[%s14 + $0x24] sm:$0xf]
  %v2645 = vld [vmem:[%s14 + $0x28] sm:$0xf]
  %v2646 = vld [vmem:[%s14 + $0x2c] sm:$0xf]
  %v2647 = vld [vmem:[%s14 + $0x30] sm:$0x3]
  %v2648 = vld [vmem:[%s15] sm:$0x1]
  %v2650 = vlaneseq
  %v2651 = vshrl.u32 %v2650, 7
  %v2652 = vsub.s32 0, %v2651
  %v2653 = vrot.slane %v2648, %v2652
  %v2668 = vunpack.c.l.b16 %v2635
  %v2669 = vunpack.c.l.b16 %v2636
  %v2670 = vunpack.c.l.b16 %v2637
  %v2671 = vunpack.c.l.b16 %v2638
  %v2672 = vunpack.c.l.b16 %v2639
  %v2673 = vunpack.c.l.b16 %v2640
  %v2674 = vunpack.c.l.b16 %v2641
  %v2675 = vunpack.c.l.b16 %v2642
  %v2676 = vunpack.c.l.b16 %v2643
  %v2677 = vunpack.c.l.b16 %v2644
  %v2678 = vunpack.c.l.b16 %v2645
  %v2679 = vunpack.c.l.b16 %v2646
  %v2680 = vunpack.c.l.b16 %v2647
  %v2681 = vpack.c.b16 %v2669, %v2668
  %v2682 = vpack.c.b16 %v2671, %v2670
  %v2683 = vpack.c.b16 %v2673, %v2672
  %v2684 = vpack.c.b16 %v2675, %v2674
  %v2685 = vpack.c.b16 %v2677, %v2676
  %v2686 = vpack.c.b16 %v2679, %v2678
  %v2687 = vpack.c.b16 %v2680, %v2680
  %vm2694 = vcmask 818176
  %v2696 = vsel %vm2694, %v2634, 0
  %v2699 = vsel %vm666, %v2687, 0
  %2701 = vmatprep.subr.bf16.mxu0 0
  %2702 = vmatpush1.bf16.msra.mxu0 %v2681
  %2703 = vmatprep.subr.bf16.mxu0 0
  %2704 = vmatpush1.bf16.msra.mxu0 %v2682
  %2705 = vmatprep.subr.bf16.mxu0 0
  %2706 = vmatpush1.bf16.msra.mxu0 %v2683
  %2707 = vmatprep.subr.bf16.mxu0 0
  %2708 = vmatpush1.bf16.msra.mxu0 %v2684
  %2709 = vmatprep.subr.bf16.mxu0 0
  %2710 = vmatpush1.bf16.msra.mxu0 %v2685
  %2711 = vmatprep.subr.bf16.mxu0 0
  %2712 = vmatpush1.bf16.msra.mxu0 %v2686
  %2713 = vmatprep.subr.bf16.mxu0 0
  %2714 = vmatpush1.bf16.msra.mxu0 %v2699
  %2715 = vmatprep.subr.bf16.mxu0 0
  %2716 = vmatpush1.bf16.msra.mxu0 0
  %2717 = vmatprep.subr.bf16.mxu0 0
  %2718 = vmatpush1.bf16.msra.mxu0 0
  %2719 = vmatprep.subr.bf16.mxu0 0
  %2720 = vmatpush1.bf16.msra.mxu0 0
  %2721 = vmatprep.subr.bf16.mxu0 0
  %2722 = vmatpush1.bf16.msra.mxu0 0
  %2723 = vmatprep.subr.bf16.mxu0 0
  %2724 = vmatpush1.bf16.msra.mxu0 0
  %2725 = vmatprep.subr.bf16.mxu0 0
  %2726 = vmatpush1.bf16.msra.mxu0 0
  %2727 = vmatprep.subr.bf16.mxu0 0
  %2728 = vmatpush1.bf16.msra.mxu0 0
  %2729 = vmatprep.subr.bf16.mxu0 0
  %2730 = vmatpush1.bf16.msra.mxu0 0
  %2731 = vmatprep.subr.bf16.mxu0 0
  %2732 = vmatpush1.bf16.msra.mxu0 0
  %2733 = vmatprep.mubr.bf16.mxu0 0
  %2734 = vmatmul.mubr.bf16.gmra.mrb[0].mxu0 %v2696
  %v2735 = vpop.f32.mrb[0].mxu0
  %v2736 = vadd.f32 %v2653, %v2735
  %v2737 = vpop.f32.mrb[0].mxu0
  %v2738 = vpop.f32.mrb[0].mxu0
  %v2739 = vpop.f32.mrb[0].mxu0
  %2740 = vdwg.mxu0
  %v2741 = vmax.f32 %v2736, 0.0
  %v2742 = vpack.c.bf16 %v2741, %v2741
  %v2743 = vld [vmem:[%s16] sm:$0xf]
  %v2744 = vld [vmem:[%s16 + $0x4] sm:$0xf]
  %v2745 = vld [vmem:[%s16 + $0x8] sm:$0xf]
  %v2746 = vld [vmem:[%s16 + $0xc] sm:$0x1]
  %v2747 = vld [vmem:[%s17] sm:$0x1]
  %v2749 = vlaneseq
  %v2750 = vshrl.u32 %v2749, 7
  %v2751 = vsub.s32 0, %v2750
  %v2752 = vrot.slane %v2747, %v2751
  %v2758 = vunpack.c.l.b16 %v2743
  %v2759 = vunpack.c.l.b16 %v2744
  %v2760 = vunpack.c.l.b16 %v2745
  %v2761 = vunpack.c.l.b16 %v2746
  %v2762 = vpack.c.b16 %v2759, %v2758
  %v2763 = vpack.c.b16 %v2761, %v2760
  %vm2765 = vcmask 203776
  %v2767 = vsel %vm2765, %v2742, 0
  %vm2769 = vcmask 1044480
  %v2770 = vsel %vm655, 4294967295, 65535
  %v2771 = vsel %vm2769, %v2770, 0
  %v2773 = vand.u32 %v2763, %v2771
  %2775 = vmatprep.subr.bf16.mxu0 0
  %2776 = vmatpush1.bf16.msra.mxu0 %v2762
  %2777 = vmatprep.subr.bf16.mxu0 0
  %2778 = vmatpush1.bf16.msra.mxu0 %v2773
  %2779 = vmatprep.subr.bf16.mxu0 0
  %2780 = vmatpush1.bf16.msra.mxu0 0
  %2781 = vmatprep.subr.bf16.mxu0 0
  %2782 = vmatpush1.bf16.msra.mxu0 0
  %2783 = vmatprep.subr.bf16.mxu0 0
  %2784 = vmatpush1.bf16.msra.mxu0 0
  %2785 = vmatprep.subr.bf16.mxu0 0
  %2786 = vmatpush1.bf16.msra.mxu0 0
  %2787 = vmatprep.subr.bf16.mxu0 0
  %2788 = vmatpush1.bf16.msra.mxu0 0
  %2789 = vmatprep.subr.bf16.mxu0 0
  %2790 = vmatpush1.bf16.msra.mxu0 0
  %2791 = vmatprep.subr.bf16.mxu0 0
  %2792 = vmatpush1.bf16.msra.mxu0 0
  %2793 = vmatprep.subr.bf16.mxu0 0
  %2794 = vmatpush1.bf16.msra.mxu0 0
  %2795 = vmatprep.subr.bf16.mxu0 0
  %2796 = vmatpush1.bf16.msra.mxu0 0
  %2797 = vmatprep.subr.bf16.mxu0 0
  %2798 = vmatpush1.bf16.msra.mxu0 0
  %2799 = vmatprep.subr.bf16.mxu0 0
  %2800 = vmatpush1.bf16.msra.mxu0 0
  %2801 = vmatprep.subr.bf16.mxu0 0
  %2802 = vmatpush1.bf16.msra.mxu0 0
  %2803 = vmatprep.subr.bf16.mxu0 0
  %2804 = vmatpush1.bf16.msra.mxu0 0
  %2805 = vmatprep.subr.bf16.mxu0 0
  %2806 = vmatpush1.bf16.msra.mxu0 0
  %2807 = vmatprep.mubr.bf16.mxu0 0
  %2808 = vmatmul.mubr.bf16.gmra.mrb[0].mxu0 %v2767
  %v2809 = vpop.f32.mrb[0].mxu0
  %v2810 = vadd.f32 %v2752, %v2809
  %v2811 = vpop.f32.mrb[0].mxu0
  %v2812 = vpop.f32.mrb[0].mxu0
  %v2813 = vpop.f32.mrb[0].mxu0
  %2814 = vdwg.mxu0
  %v2815 = vmax.f32 %v2810, 0.0
  %2817 = vrot.lane.b32.xlu0 %v2815, 4
  %v2818 = vpop.permute.xlu0 %2817
  %2821 = vrot.lane.b32.xlu0 %v2483, 4
  %v2822 = vpop.permute.xlu0 %2821
  %2824 = vrot.lane.b32.xlu0 %v2815, 5
  %v2825 = vpop.permute.xlu0 %2824
  %vm2827 = vcmask 31744
  %v2828 = vsel %vm2827, %v2483, %v2818
  %v2829 = vsel %vm2493, %v2828, %v2822
  %vm2830 = vcmask 72704
  %v2831 = vsel %vm2830, %v2829, %v2825
  %v2832 = vpack.c.bf16 %v2831, %v2831
  %v2833 = vld [vmem:[%s18] sm:$0xf]
  %v2834 = vld [vmem:[%s18 + $0x4] sm:$0x1]
  %v2835 = vld [vmem:[%s19] sm:$0x1]
  %v2837 = vlaneseq
  %v2838 = vshrl.u32 %v2837, 7
  %v2839 = vsub.s32 0, %v2838
  %v2840 = vrot.slane %v2835, %v2839
  %v2844 = vunpack.c.l.b16 %v2833
  %v2845 = vunpack.c.l.b16 %v2834
  %v2846 = vpack.c.b16 %v2845, %v2844
  %vm2847 = vcmask 80896
  %v2849 = vsel %vm2847, %v2832, 0
  %v2852 = vsel %vm2769, %v2846, 0
  %2854 = vmatprep.subr.bf16.mxu0 0
  %2855 = vmatpush1.bf16.msra.mxu0 %v2852
  %2856 = vmatprep.subr.bf16.mxu0 0
  %2857 = vmatpush1.bf16.msra.mxu0 0
  %2858 = vmatprep.subr.bf16.mxu0 0
  %2859 = vmatpush1.bf16.msra.mxu0 0
  %2860 = vmatprep.subr.bf16.mxu0 0
  %2861 = vmatpush1.bf16.msra.mxu0 0
  %2862 = vmatprep.subr.bf16.mxu0 0
  %2863 = vmatpush1.bf16.msra.mxu0 0
  %2864 = vmatprep.subr.bf16.mxu0 0
  %2865 = vmatpush1.bf16.msra.mxu0 0
  %2866 = vmatprep.subr.bf16.mxu0 0
  %2867 = vmatpush1.bf16.msra.mxu0 0
  %2868 = vmatprep.subr.bf16.mxu0 0
  %2869 = vmatpush1.bf16.msra.mxu0 0
  %2870 = vmatprep.subr.bf16.mxu0 0
  %2871 = vmatpush1.bf16.msra.mxu0 0
  %2872 = vmatprep.subr.bf16.mxu0 0
  %2873 = vmatpush1.bf16.msra.mxu0 0
  %2874 = vmatprep.subr.bf16.mxu0 0
  %2875 = vmatpush1.bf16.msra.mxu0 0
  %2876 = vmatprep.subr.bf16.mxu0 0
  %2877 = vmatpush1.bf16.msra.mxu0 0
  %2878 = vmatprep.subr.bf16.mxu0 0
  %2879 = vmatpush1.bf16.msra.mxu0 0
  %2880 = vmatprep.subr.bf16.mxu0 0
  %2881 = vmatpush1.bf16.msra.mxu0 0
  %2882 = vmatprep.subr.bf16.mxu0 0
  %2883 = vmatpush1.bf16.msra.mxu0 0
  %2884 = vmatprep.subr.bf16.mxu0 0
  %2885 = vmatpush1.bf16.msra.mxu0 0
  %2886 = vmatprep.mubr.bf16.mxu0 0
  %2887 = vmatmul.mubr.bf16.gmra.mrb[0].mxu0 %v2849
  %v2888 = vpop.f32.mrb[0].mxu0
  %v2889 = vadd.f32 %v2840, %v2888
  %v2890 = vpop.f32.mrb[0].mxu0
  %v2891 = vpop.f32.mrb[0].mxu0
  %v2892 = vpop.f32.mrb[0].mxu0
  %2893 = vdwg.mxu0
  %v2894 = vtanh.pop %v2889
  %v2895 = vsel %vm2827, %v2894, %v2889
  %vm2896 = vcmask 58368
  %2897 = vst.msk [vmem:[%s20] sm:$0x3] %vm2896, %v2895
  // Predicated region
  $region82: #{forward.1} parent=0 // pred_check
    _
  $region83: #{forward.1} parent=0 // pred_check_branch
    %2899 = sbr.rel (0) target = $region85
  $region84: #{forward.1} parent=0 // pred_region
    _
  $region85: #{forward.1} parent=0 // pred_fallthru
    _
  // Predicated region
  $region86: #{forward.1} parent=0 // pred_check
    _
  $region87: #{forward.1} parent=0 // pred_check_branch
    %2901 = sbr.rel (0) target = $region89
  $region88: #{forward.1} parent=0 // pred_region
    _
  $region89: #{forward.1} parent=0 // pred_fallthru
    _

</llo_original>
